<compile_context>
chip_gen: v7x
topology: tpu7x:2x2x1
jax: 0.10.0
libtpu: 0.0.40
codegen_flags: <defaults>
</compile_context>

<pallas_src>
import functools

import jax
import jax.numpy as jnp
import numpy as np
from jax.experimental import pallas as pl
from jax.experimental.pallas import tpu as pltpu

LANE = 128


# =============================================================================
# 1) PitchPredictorLoss.forward == MSELoss(outputs, targets)   (the spec)
# =============================================================================
def _mse_loss_kernel(o_ref, t_ref, loss_ref, acc_ref, *, inv_count):
    step = pl.program_id(0)

    @pl.when(step == 0)
    def _():
        acc_ref[...] = jnp.zeros_like(acc_ref)

    d = o_ref[...] - t_ref[...]
    acc_ref[...] += jnp.sum(d * d, axis=0, keepdims=True)      # (1, 128) partials

    @pl.when(step == pl.num_programs(0) - 1)
    def _():
        loss_ref[0, 0] = jnp.sum(acc_ref[...]) * inv_count


def pitch_predictor_loss(outputs, targets, *, row_block=512):
    """MSE loss value. outputs: (B, T) log-domain preds, targets: (B, T)."""
    assert outputs.shape == targets.shape
    count = outputs.size                          # TRUE (unpadded) element count
    o = outputs.astype(jnp.float32).reshape(-1)
    t = targets.astype(jnp.float32).reshape(-1)
    rows = pl.cdiv(o.size, LANE)
    rb = int(min(row_block, ((rows + 7) // 8) * 8))
    rows_pad = ((rows + rb - 1) // rb) * rb
    pad = rows_pad * LANE - o.size
    # Zero padding contributes exactly 0 to the sum-of-squares.
    o = jnp.pad(o, (0, pad)).reshape(rows_pad, LANE)
    t = jnp.pad(t, (0, pad)).reshape(rows_pad, LANE)

    loss = pl.pallas_call(
        functools.partial(_mse_loss_kernel, inv_count=1.0 / count),
        out_shape=jax.ShapeDtypeStruct((1, 1), jnp.float32),
        grid_spec=pltpu.PrefetchScalarGridSpec(
            num_scalar_prefetch=0,
            grid=(rows_pad // rb,),
            in_specs=[pl.BlockSpec((rb, LANE), lambda i: (i, 0)),
                      pl.BlockSpec((rb, LANE), lambda i: (i, 0))],
            out_specs=pl.BlockSpec((1, 1), lambda i: (0, 0),
                                   memory_space=pltpu.MemorySpace.SMEM),
            scratch_shapes=[pltpu.VMEM((1, LANE), jnp.float32)]),
        compiler_params=pltpu.CompilerParams(
            dimension_semantics=("arbitrary",),
            vmem_limit_bytes=32 * 1024 * 1024),
    )(o, t)
    return loss[0, 0]


# =============================================================================
# 2) PitchPredictor forward (produces f0_spec / f0_mean / f0_std / f0_log)
# =============================================================================
def _pitch_kernel(xs_ref, olen_ref,
                  w1_ref, b1_ref, g1_ref, be1_ref,
                  w2_ref, b2_ref, g2_ref, be2_ref,
                  wspec_ref, bspec_ref,
                  spec_ref, xavg_ref, *, t_valid, out_sub):
    bb, tt, cin = xs_ref.shape
    n = bb * tt

    # --- masks derived in-kernel from olens (no x_masks DMA stream) ---------
    t_idx = jax.lax.broadcasted_iota(jnp.int32, (bb, tt, 1), 1)   # (bb, tt, 1)
    olen = olen_ref[...]                                          # (bb, 1, 1) i32
    keep = (t_idx < olen).astype(jnp.float32).reshape(n, 1)       # 1 = valid frame
    # Conv boundary masks use the ORIGINAL length t_valid (torch zero-pads the
    # length-T sequence); rows in [t_valid, tt) only exist because of the
    # 128-lane time padding and are keep-masked at the end.
    not_first = (t_idx > 0).astype(jnp.float32).reshape(n, 1)
    not_last = (t_idx < t_valid - 1).astype(jnp.float32).reshape(n, 1)

    def conv_relu_ln(xb, w_ref, b_ref, g_ref, be_ref):
        # Conv1d(k=3, stride=1, pad=1): three MXU dots on the UNSHIFTED bf16
        # input; the +-1 taps are realized by rolling the f32 results (XLU,
        # idle slots) and masking the rows that wrapped across sequence/array
        # boundaries -- identical to torch's zero padding by linearity.
        z0 = jnp.dot(xb, w_ref[0], preferred_element_type=jnp.float32)
        z1 = jnp.dot(xb, w_ref[1], preferred_element_type=jnp.float32)
        z2 = jnp.dot(xb, w_ref[2], preferred_element_type=jnp.float32)
        y = (pltpu.roll(z0, 1, axis=0) * not_first + z1
             + pltpu.roll(z2, n - 1, axis=0) * not_last + b_ref[...])
        y = jnp.maximum(y, 0.0)                        # ReLU
        mu = jnp.mean(y, axis=-1, keepdims=True)       # LayerNorm (channels)
        var = jnp.maximum(jnp.mean(y * y, axis=-1, keepdims=True) - mu * mu,
                          0.0)                         # one-pass statistics
        return (y - mu) * jax.lax.rsqrt(var + 1e-5) * g_ref[...] + be_ref[...]
        # dropout: eval-mode identity

    x0 = xs_ref[...].reshape(n, cin)                            # bf16 as DMA'd
    h = conv_relu_ln(x0, w1_ref, b1_ref, g1_ref, be1_ref)       # (n, C) f32
    h = conv_relu_ln(h.astype(jnp.bfloat16), w2_ref, b2_ref, g2_ref, be2_ref)
    nch = h.shape[1]

    # Spectrogram head: lane-dense matmul (OUT padded to 128 lanes), then a
    # tile-aligned (tt, 128) -> (128, tt) transpose per batch row so the STORE
    # is time-major (T on lanes, only ceil(OUT/8)*8 sublanes written):
    # ~8x less HBM writeback than storing the 128-lane f32 slab.
    f0 = (jnp.dot(h.astype(jnp.bfloat16), wspec_ref[...],
                  preferred_element_type=jnp.float32) + bspec_ref[...])
    f0 = (f0 * keep).reshape(bb, tt, -1)                        # (bb, tt, OUT_MM)
    for j in range(bb):                                         # static unroll
        spec_ref[j] = jnp.transpose(f0[j])[:out_sub, :]

    # Masked time-average; the tiny (B, C) @ (C, 2) head runs in the wrapper.
    hm = (h * keep).reshape(bb, tt, nch)
    olen_f = jnp.maximum(olen.astype(jnp.float32), 1.0)         # guard olen == 0
    xavg_ref[...] = jnp.sum(hm, axis=1, keepdims=True) / olen_f  # exact divide


def _pick_batch_block(B, T_pad, idim, C, out_mm, out_sub,
                      vmem_budget=16 * 1024 * 1024):
    """Batch rows per grid step: >= 2 steps (v7x has 2 TensorCores) and an
    estimated per-step footprint (double-buffered IO + temps) under
    `vmem_budget`, so the tile also fits v5e (16 MiB default scoped VMEM) and
    v7x (64 MiB physical)."""
    def step_bytes(bb):
        n = bb * T_pad
        dbuf = 2 * (n * idim * 2                    # xs in (bf16)
                    + bb * out_sub * T_pad * 4      # time-major spec out (f32)
                    + bb * C * 4 + 8)               # x_avg out + olens
        temps = n * (out_mm * 4 * 2                 # f0 + transposed stores
                     + C * 4 * 6                    # z0..z2 / y / h / hm
                     + idim * 2)                    # x0
        return dbuf + temps

    bb = max(1, min(8, -(-B // 2)))                 # ceil(B/2), capped at 8
    while bb > 1 and step_bytes(bb) > vmem_budget:
        bb -= 1
    return bb


def pitch_predictor_forward(xs, olens, params, batch_block=None):
    """xs: (B, T, idim) f32, olens: (B,) valid lengths.

    Returns (f0_spec (B,T,OUT), f0_mean (B,), f0_std (B,), f0_log (B,T));
    f0_log == f0_spec[:, :, 0] but is sliced lane-densely from the kernel's
    time-major output, so it is the cheap input for pitch_predictor_loss.
    """
    B, T, idim = xs.shape
    K, _, C = params["w1"].shape
    assert K == 3, "PitchPredictor uses kernel_size=3 convs"
    OUT = params["wspec"].shape[1]
    OUT_MM = ((OUT + LANE - 1) // LANE) * LANE      # matmul lane padding (128)
    OUT_SUB = ((OUT + 7) // 8) * 8                  # stored sublanes (time-major)
    T_pad = ((T + LANE - 1) // LANE) * LANE         # T is the lane axis of stores

    bb = batch_block if batch_block is not None else _pick_batch_block(
        B, T_pad, idim, C, OUT_MM, OUT_SUB)
    nb = pl.cdiv(B, bb)
    B_pad = nb * bb

    if B_pad != B or T_pad != T:
        # Zero padding is load-bearing: layer-1 taps at t = T-1 read row T,
        # and padded batch rows must yield zeros under the keep mask.
        xs = jnp.pad(xs, ((0, B_pad - B), (0, T_pad - T), (0, 0)))
        olens = jnp.pad(olens, (0, B_pad - B))

    xs_bf = xs.astype(jnp.bfloat16)                 # bf16 MXU operands, half DMA
    olens_i = olens.astype(jnp.int32).reshape(B_pad, 1, 1)
    w1 = params["w1"].astype(jnp.bfloat16)          # (3, idim, C), un-folded
    w2 = params["w2"].astype(jnp.bfloat16)          # (3, C, C)
    wspec = jnp.pad(params["wspec"],
                    ((0, 0), (0, OUT_MM - OUT))).astype(jnp.bfloat16)
    bspec = jnp.pad(params["bspec"],
                    ((0, 0), (0, OUT_MM - OUT))).astype(jnp.float32)

    grid_spec = pltpu.PrefetchScalarGridSpec(
        num_scalar_prefetch=0,
        grid=(nb,),
        in_specs=[
            pl.BlockSpec((bb, T_pad, idim), lambda i: (i, 0, 0)),   # xs bf16
            pl.BlockSpec((bb, 1, 1), lambda i: (i, 0, 0)),          # olens i32
            pl.BlockSpec((K, idim, C), lambda i: (0, 0, 0)),        # w1
            pl.BlockSpec((1, C), lambda i: (0, 0)),                 # b1
            pl.BlockSpec((1, C), lambda i: (0, 0)),                 # gamma1
            pl.BlockSpec((1, C), lambda i: (0, 0)),                 # beta1
            pl.BlockSpec((K, C, C), lambda i: (0, 0, 0)),           # w2
            pl.BlockSpec((1, C), lambda i: (0, 0)),                 # b2
            pl.BlockSpec((1, C), lambda i: (0, 0)),                 # gamma2
            pl.BlockSpec((1, C), lambda i: (0, 0)),                 # beta2
            pl.BlockSpec((C, OUT_MM), lambda i: (0, 0)),            # wspec pad
            pl.BlockSpec((1, OUT_MM), lambda i: (0, 0)),            # bspec pad
        ],
        out_specs=[
            pl.BlockSpec((bb, OUT_SUB, T_pad), lambda i: (i, 0, 0)),  # f0 (t-major)
            pl.BlockSpec((bb, 1, C), lambda i: (i, 0, 0)),            # x_avg
        ],
    )

    spec_tm, x_avg = pl.pallas_call(
        functools.partial(_pitch_kernel, t_valid=T, out_sub=OUT_SUB),
        out_shape=(jax.ShapeDtypeStruct((B_pad, OUT_SUB, T_pad), jnp.float32),
                   jax.ShapeDtypeStruct((B_pad, 1, C), jnp.float32)),
        grid_spec=grid_spec,
        compiler_params=pltpu.CompilerParams(
            dimension_semantics=("parallel",),
            vmem_limit_bytes=48 * 1024 * 1024),
    )(xs_bf, olens_i,
      w1, params["b1"], params["g1"], params["be1"],
      w2, params["b2"], params["g2"], params["be2"],
      wspec, bspec)

    f0_log = spec_tm[:B, 0, :T]                                # lane-dense ch 0
    f0_spec = jnp.transpose(spec_tm[:B, :OUT, :T], (0, 2, 1))  # (B, T, OUT)
    ms = x_avg[:B, 0, :] @ params["wms"] + params["bms"]       # tiny head in XLA
    return f0_spec, ms[:, 0], ms[:, 1], f0_log


# ------------------------- pure-JAX reference --------------------------------
def _ref_forward(xs, olens, p):
    B, T, _ = xs.shape
    mask = (jnp.arange(T)[None, :] >= olens[:, None]).astype(jnp.float32)[..., None]

    def conv1d(x, w, b):   # bf16 MXU operands, f32 accumulation (as in kernel)
        xp = jnp.pad(x, ((0, 0), (1, 1), (0, 0)))
        y = sum(jnp.einsum("btc,cd->btd",
                           xp[:, k:k + T].astype(jnp.bfloat16),
                           w[k].astype(jnp.bfloat16),
                           preferred_element_type=jnp.float32)
                for k in range(3))
        return y + b

    def ln(y, g, be):
        mu = y.mean(-1, keepdims=True)
        var = ((y - mu) ** 2).mean(-1, keepdims=True)
        return (y - mu) / jnp.sqrt(var + 1e-5) * g + be

    h = ln(jax.nn.relu(conv1d(xs, p["w1"], p["b1"])), p["g1"], p["be1"])
    h = ln(jax.nn.relu(conv1d(h, p["w2"], p["b2"])), p["g2"], p["be2"])
    f0_spec = (jnp.einsum("btc,cd->btd", h.astype(jnp.bfloat16),
                          p["wspec"].astype(jnp.bfloat16),
                          preferred_element_type=jnp.float32)
               + p["bspec"]) * (1.0 - mask)
    hm = h * (1.0 - mask)
    x_avg = hm.sum(1) / jnp.maximum(olens[:, None], 1.0)
    ms = x_avg @ p["wms"] + p["bms"]
    return f0_spec, ms[:, 0], ms[:, 1]


# ---------------------------------- main --------------------------------------
if __name__ == "__main__":
    B, T, idim, C, K, OUT = 2, 16, 8, 32, 3, 10

    key = jax.random.PRNGKey(0)
    ks = jax.random.split(key, 12)

    def rnd(k, shape, scale=0.1):
        return (scale * jax.random.normal(k, shape)).astype(jnp.float32)

    # Conv weights stored as (K, Cin, Cout) == torch conv weight.transpose(2,1,0)
    params = {
        "w1": rnd(ks[0], (K, idim, C)),
        "b1": rnd(ks[1], (1, C)),
        "g1": jnp.ones((1, C), jnp.float32),
        "be1": jnp.zeros((1, C), jnp.float32),
        "w2": rnd(ks[2], (K, C, C)),
        "b2": rnd(ks[3], (1, C)),
        "g2": jnp.ones((1, C), jnp.float32),
        "be2": jnp.zeros((1, C), jnp.float32),
        "wspec": rnd(ks[4], (C, OUT)),
        "bspec": rnd(ks[5], (1, OUT)),
        "wms": rnd(ks[6], (C, 2)),    # columns: [mean head, std head]
        "bms": rnd(ks[7], (1, 2)),
    }
    # TODO(synk): PitchPredictor.inference()/to_one_hot() (pycwt wavelet
    # reconstruction + sklearn scaling + pitch_bins bucketization) are
    # host-side and not part of forward(); not implemented as kernels.

    xs = rnd(ks[8], (B, T, idim), scale=1.0)
    olens = jnp.array([16.0, 12.0], dtype=jnp.float32)

    f0_spec, f0_mean, f0_std, f0_log = pitch_predictor_forward(xs, olens, params)

    # The spec module: MSE between (log-domain) predictions and targets,
    # fed the lane-dense channel-0 slab (no strided lane-0 gather).
    targets = rnd(ks[9], (B, T), scale=1.0)
    loss = pitch_predictor_loss(f0_log, targets)

    jax.block_until_ready((f0_spec, f0_mean, f0_std, f0_log, loss))

    # ---- correctness checks ----
    r_spec, r_mean, r_std = _ref_forward(xs, olens, params)
    np.testing.assert_allclose(np.asarray(f0_spec), np.asarray(r_spec),
                               rtol=5e-3, atol=5e-3)
    np.testing.assert_allclose(np.asarray(f0_log),
                               np.asarray(f0_spec[:, :, 0]), rtol=0, atol=0)
    np.testing.assert_allclose(np.asarray(f0_mean), np.asarray(r_mean),
                               rtol=5e-3, atol=5e-3)
    np.testing.assert_allclose(np.asarray(f0_std), np.asarray(r_std),
                               rtol=5e-3, atol=5e-3)
    r_loss = jnp.mean((f0_log - targets) ** 2)
    np.testing.assert_allclose(np.asarray(loss), np.asarray(r_loss),
                               rtol=1e-5, atol=1e-6)

    print("KERNEL_OK")
</pallas_src>

<mosaic_0001>
module attributes {stable_mosaic.version = 11 : i64} {
  func.func @_pitch_kernel(%arg0: i32, %arg1: memref<1x128x8xbf16, #tpu.memory_space<vmem>>, %arg2: memref<1x1x1xi32, #tpu.memory_space<vmem>>, %arg3: memref<3x8x32xbf16, #tpu.memory_space<vmem>>, %arg4: memref<1x32xf32, #tpu.memory_space<vmem>>, %arg5: memref<1x32xf32, #tpu.memory_space<vmem>>, %arg6: memref<1x32xf32, #tpu.memory_space<vmem>>, %arg7: memref<3x32x32xbf16, #tpu.memory_space<vmem>>, %arg8: memref<1x32xf32, #tpu.memory_space<vmem>>, %arg9: memref<1x32xf32, #tpu.memory_space<vmem>>, %arg10: memref<1x32xf32, #tpu.memory_space<vmem>>, %arg11: memref<32x128xbf16, #tpu.memory_space<vmem>>, %arg12: memref<1x128xf32, #tpu.memory_space<vmem>>, %arg13: memref<1x16x128xf32, #tpu.memory_space<vmem>>, %arg14: memref<1x1x32xf32, #tpu.memory_space<vmem>>) attributes {dimension_semantics = [#tpu.dimension_semantics<parallel>], iteration_bounds = array<i64: 2>, scalar_prefetch = 0 : i64, scratch_operands = 0 : i64, tpu.core_type = #tpu.core_type<tc>, window_params = [{transform_indices = @transform_0, window_bounds = array<i64: 1, 128, 8>}, {transform_indices = @transform_1, window_bounds = array<i64: 1, 1, 1>}, {pipeline_mode = #tpu.pipeline_mode<synchronous>, transform_indices = @transform_2, window_bounds = array<i64: 3, 8, 32>}, {pipeline_mode = #tpu.pipeline_mode<synchronous>, transform_indices = @transform_3, window_bounds = array<i64: 1, 32>}, {pipeline_mode = #tpu.pipeline_mode<synchronous>, transform_indices = @transform_4, window_bounds = array<i64: 1, 32>}, {pipeline_mode = #tpu.pipeline_mode<synchronous>, transform_indices = @transform_5, window_bounds = array<i64: 1, 32>}, {pipeline_mode = #tpu.pipeline_mode<synchronous>, transform_indices = @transform_6, window_bounds = array<i64: 3, 32, 32>}, {pipeline_mode = #tpu.pipeline_mode<synchronous>, transform_indices = @transform_7, window_bounds = array<i64: 1, 32>}, {pipeline_mode = #tpu.pipeline_mode<synchronous>, transform_indices = @transform_8, window_bounds = array<i64: 1, 32>}, {pipeline_mode = #tpu.pipeline_mode<synchronous>, transform_indices = @transform_9, window_bounds = array<i64: 1, 32>}, {pipeline_mode = #tpu.pipeline_mode<synchronous>, transform_indices = @transform_10, window_bounds = array<i64: 32, 128>}, {pipeline_mode = #tpu.pipeline_mode<synchronous>, transform_indices = @transform_11, window_bounds = array<i64: 1, 128>}, {transform_indices = @transform_12, window_bounds = array<i64: 1, 16, 128>}, {transform_indices = @transform_13, window_bounds = array<i64: 1, 1, 32>}]} {
    %0 = tpu.iota {dimensions = array<i32: 1>} : vector<1x128x1xi32>
    %c0 = arith.constant 0 : index
    %c0_0 = arith.constant 0 : index
    %c0_1 = arith.constant 0 : index
    %1 = vector.load %arg2[%c0, %c0_0, %c0_1] : memref<1x1x1xi32, #tpu.memory_space<vmem>>, vector<1x1x1xi32>
    %2 = vector.broadcast %1 : vector<1x1x1xi32> to vector<1x128x1xi32>
    %3 = arith.cmpi slt, %0, %2 : vector<1x128x1xi32>
    %4 = arith.extui %3 : vector<1x128x1xi1> to vector<1x128x1xi32>
    %5 = arith.sitofp %4 : vector<1x128x1xi32> to vector<1x128x1xf32>
    %6 = vector.shape_cast %5 : vector<1x128x1xf32> to vector<128x1xf32>
    %c0_i32 = arith.constant 0 : i32
    %7 = vector.broadcast %c0_i32 : i32 to vector<1x128x1xi32>
    %8 = arith.cmpi sgt, %0, %7 : vector<1x128x1xi32>
    %9 = arith.extui %8 : vector<1x128x1xi1> to vector<1x128x1xi32>
    %10 = arith.sitofp %9 : vector<1x128x1xi32> to vector<1x128x1xf32>
    %11 = vector.shape_cast %10 : vector<1x128x1xf32> to vector<128x1xf32>
    %c15_i32 = arith.constant 15 : i32
    %12 = vector.broadcast %c15_i32 : i32 to vector<1x128x1xi32>
    %13 = arith.cmpi slt, %0, %12 : vector<1x128x1xi32>
    %14 = arith.extui %13 : vector<1x128x1xi1> to vector<1x128x1xi32>
    %15 = arith.sitofp %14 : vector<1x128x1xi32> to vector<1x128x1xf32>
    %16 = vector.shape_cast %15 : vector<1x128x1xf32> to vector<128x1xf32>
    %c0_2 = arith.constant 0 : index
    %c0_3 = arith.constant 0 : index
    %c0_4 = arith.constant 0 : index
    %17 = vector.load %arg1[%c0_2, %c0_3, %c0_4] : memref<1x128x8xbf16, #tpu.memory_space<vmem>>, vector<1x128x8xbf16>
    %18 = vector.shape_cast %17 : vector<1x128x8xbf16> to vector<128x8xbf16>
    %c0_5 = arith.constant 0 : index
    %c0_6 = arith.constant 0 : index
    %c0_7 = arith.constant 0 : index
    %19 = vector.load %arg3[%c0_5, %c0_6, %c0_7] : memref<3x8x32xbf16, #tpu.memory_space<vmem>>, vector<1x8x32xbf16>
    %20 = vector.shape_cast %19 : vector<1x8x32xbf16> to vector<8x32xbf16>
    %cst = arith.constant dense<0.000000e+00> : vector<128x32xf32>
    %21 = tpu.matmul %18, %20, %cst {dimension_numbers = #tpu.dot_dimension_numbers<[1], [0], [0], [1], [0, 0, 1, 1], [], []>} : vector<128x8xbf16>, vector<8x32xbf16>, vector<128x32xf32> -> vector<128x32xf32>
    %c1 = arith.constant 1 : index
    %c0_8 = arith.constant 0 : index
    %c0_9 = arith.constant 0 : index
    %22 = vector.load %arg3[%c1, %c0_8, %c0_9] : memref<3x8x32xbf16, #tpu.memory_space<vmem>>, vector<1x8x32xbf16>
    %23 = vector.shape_cast %22 : vector<1x8x32xbf16> to vector<8x32xbf16>
    %cst_10 = arith.constant dense<0.000000e+00> : vector<128x32xf32>
    %24 = tpu.matmul %18, %23, %cst_10 {dimension_numbers = #tpu.dot_dimension_numbers<[1], [0], [0], [1], [0, 0, 1, 1], [], []>} : vector<128x8xbf16>, vector<8x32xbf16>, vector<128x32xf32> -> vector<128x32xf32>
    %c2 = arith.constant 2 : index
    %c0_11 = arith.constant 0 : index
    %c0_12 = arith.constant 0 : index
    %25 = vector.load %arg3[%c2, %c0_11, %c0_12] : memref<3x8x32xbf16, #tpu.memory_space<vmem>>, vector<1x8x32xbf16>
    %26 = vector.shape_cast %25 : vector<1x8x32xbf16> to vector<8x32xbf16>
    %cst_13 = arith.constant dense<0.000000e+00> : vector<128x32xf32>
    %27 = tpu.matmul %18, %26, %cst_13 {dimension_numbers = #tpu.dot_dimension_numbers<[1], [0], [0], [1], [0, 0, 1, 1], [], []>} : vector<128x8xbf16>, vector<8x32xbf16>, vector<128x32xf32> -> vector<128x32xf32>
    %c1_i32 = arith.constant 1 : i32
    %28 = tpu.dynamic_rotate %21 by %c1_i32 dim 0 : vector<128x32xf32>, i32 -> vector<128x32xf32>
    %29 = vector.broadcast %11 : vector<128x1xf32> to vector<128x32xf32>
    %30 = arith.mulf %28, %29 : vector<128x32xf32>
    %31 = arith.addf %30, %24 : vector<128x32xf32>
    %c127_i32 = arith.constant 127 : i32
    %32 = tpu.dynamic_rotate %27 by %c127_i32 dim 0 : vector<128x32xf32>, i32 -> vector<128x32xf32>
    %33 = vector.broadcast %16 : vector<128x1xf32> to vector<128x32xf32>
    %34 = arith.mulf %32, %33 : vector<128x32xf32>
    %35 = arith.addf %31, %34 : vector<128x32xf32>
    %c0_14 = arith.constant 0 : index
    %c0_15 = arith.constant 0 : index
    %36 = vector.load %arg4[%c0_14, %c0_15] : memref<1x32xf32, #tpu.memory_space<vmem>>, vector<1x32xf32>
    %37 = vector.broadcast %36 : vector<1x32xf32> to vector<128x32xf32>
    %38 = arith.addf %35, %37 : vector<128x32xf32>
    %cst_16 = arith.constant 0.000000e+00 : f32
    %39 = vector.broadcast %cst_16 : f32 to vector<128x32xf32>
    %40 = arith.maximumf %38, %39 : vector<128x32xf32>
    %cst_17 = arith.constant dense<0.000000e+00> : vector<128xf32>
    %41 = vector.multi_reduction <add>, %40, %cst_17 [1] : vector<128x32xf32> to vector<128xf32>
    %42 = vector.shape_cast %41 : vector<128xf32> to vector<128x1xf32>
    %cst_18 = arith.constant 3.200000e+01 : f32
    %43 = vector.broadcast %cst_18 : f32 to vector<128x1xf32>
    %44 = arith.divf %42, %43 : vector<128x1xf32>
    %45 = arith.mulf %40, %40 : vector<128x32xf32>
    %cst_19 = arith.constant dense<0.000000e+00> : vector<128xf32>
    %46 = vector.multi_reduction <add>, %45, %cst_19 [1] : vector<128x32xf32> to vector<128xf32>
    %47 = vector.shape_cast %46 : vector<128xf32> to vector<128x1xf32>
    %cst_20 = arith.constant 3.200000e+01 : f32
    %48 = vector.broadcast %cst_20 : f32 to vector<128x1xf32>
    %49 = arith.divf %47, %48 : vector<128x1xf32>
    %50 = arith.mulf %44, %44 : vector<128x1xf32>
    %51 = arith.subf %49, %50 : vector<128x1xf32>
    %cst_21 = arith.constant 0.000000e+00 : f32
    %52 = vector.broadcast %cst_21 : f32 to vector<128x1xf32>
    %53 = arith.maximumf %51, %52 : vector<128x1xf32>
    %54 = vector.broadcast %44 : vector<128x1xf32> to vector<128x32xf32>
    %55 = arith.subf %40, %54 : vector<128x32xf32>
    %cst_22 = arith.constant 9.99999974E-6 : f32
    %56 = vector.broadcast %cst_22 : f32 to vector<128x1xf32>
    %57 = arith.addf %53, %56 : vector<128x1xf32>
    %58 = math.rsqrt %57 : vector<128x1xf32>
    %59 = vector.broadcast %58 : vector<128x1xf32> to vector<128x32xf32>
    %60 = arith.mulf %55, %59 : vector<128x32xf32>
    %c0_23 = arith.constant 0 : index
    %c0_24 = arith.constant 0 : index
    %61 = vector.load %arg5[%c0_23, %c0_24] : memref<1x32xf32, #tpu.memory_space<vmem>>, vector<1x32xf32>
    %62 = vector.broadcast %61 : vector<1x32xf32> to vector<128x32xf32>
    %63 = arith.mulf %60, %62 : vector<128x32xf32>
    %c0_25 = arith.constant 0 : index
    %c0_26 = arith.constant 0 : index
    %64 = vector.load %arg6[%c0_25, %c0_26] : memref<1x32xf32, #tpu.memory_space<vmem>>, vector<1x32xf32>
    %65 = vector.broadcast %64 : vector<1x32xf32> to vector<128x32xf32>
    %66 = arith.addf %63, %65 : vector<128x32xf32>
    %67 = arith.truncf %66 : vector<128x32xf32> to vector<128x32xbf16>
    %c0_27 = arith.constant 0 : index
    %c0_28 = arith.constant 0 : index
    %c0_29 = arith.constant 0 : index
    %68 = vector.load %arg7[%c0_27, %c0_28, %c0_29] : memref<3x32x32xbf16, #tpu.memory_space<vmem>>, vector<1x32x32xbf16>
    %69 = vector.shape_cast %68 : vector<1x32x32xbf16> to vector<32x32xbf16>
    %cst_30 = arith.constant dense<0.000000e+00> : vector<128x32xf32>
    %70 = tpu.matmul %67, %69, %cst_30 {dimension_numbers = #tpu.dot_dimension_numbers<[1], [0], [0], [1], [0, 0, 1, 1], [], []>} : vector<128x32xbf16>, vector<32x32xbf16>, vector<128x32xf32> -> vector<128x32xf32>
    %c1_31 = arith.constant 1 : index
    %c0_32 = arith.constant 0 : index
    %c0_33 = arith.constant 0 : index
    %71 = vector.load %arg7[%c1_31, %c0_32, %c0_33] : memref<3x32x32xbf16, #tpu.memory_space<vmem>>, vector<1x32x32xbf16>
    %72 = vector.shape_cast %71 : vector<1x32x32xbf16> to vector<32x32xbf16>
    %cst_34 = arith.constant dense<0.000000e+00> : vector<128x32xf32>
    %73 = tpu.matmul %67, %72, %cst_34 {dimension_numbers = #tpu.dot_dimension_numbers<[1], [0], [0], [1], [0, 0, 1, 1], [], []>} : vector<128x32xbf16>, vector<32x32xbf16>, vector<128x32xf32> -> vector<128x32xf32>
    %c2_35 = arith.constant 2 : index
    %c0_36 = arith.constant 0 : index
    %c0_37 = arith.constant 0 : index
    %74 = vector.load %arg7[%c2_35, %c0_36, %c0_37] : memref<3x32x32xbf16, #tpu.memory_space<vmem>>, vector<1x32x32xbf16>
    %75 = vector.shape_cast %74 : vector<1x32x32xbf16> to vector<32x32xbf16>
    %cst_38 = arith.constant dense<0.000000e+00> : vector<128x32xf32>
    %76 = tpu.matmul %67, %75, %cst_38 {dimension_numbers = #tpu.dot_dimension_numbers<[1], [0], [0], [1], [0, 0, 1, 1], [], []>} : vector<128x32xbf16>, vector<32x32xbf16>, vector<128x32xf32> -> vector<128x32xf32>
    %c1_i32_39 = arith.constant 1 : i32
    %77 = tpu.dynamic_rotate %70 by %c1_i32_39 dim 0 : vector<128x32xf32>, i32 -> vector<128x32xf32>
    %78 = vector.broadcast %11 : vector<128x1xf32> to vector<128x32xf32>
    %79 = arith.mulf %77, %78 : vector<128x32xf32>
    %80 = arith.addf %79, %73 : vector<128x32xf32>
    %c127_i32_40 = arith.constant 127 : i32
    %81 = tpu.dynamic_rotate %76 by %c127_i32_40 dim 0 : vector<128x32xf32>, i32 -> vector<128x32xf32>
    %82 = vector.broadcast %16 : vector<128x1xf32> to vector<128x32xf32>
    %83 = arith.mulf %81, %82 : vector<128x32xf32>
    %84 = arith.addf %80, %83 : vector<128x32xf32>
    %c0_41 = arith.constant 0 : index
    %c0_42 = arith.constant 0 : index
    %85 = vector.load %arg8[%c0_41, %c0_42] : memref<1x32xf32, #tpu.memory_space<vmem>>, vector<1x32xf32>
    %86 = vector.broadcast %85 : vector<1x32xf32> to vector<128x32xf32>
    %87 = arith.addf %84, %86 : vector<128x32xf32>
    %cst_43 = arith.constant 0.000000e+00 : f32
    %88 = vector.broadcast %cst_43 : f32 to vector<128x32xf32>
    %89 = arith.maximumf %87, %88 : vector<128x32xf32>
    %cst_44 = arith.constant dense<0.000000e+00> : vector<128xf32>
    %90 = vector.multi_reduction <add>, %89, %cst_44 [1] : vector<128x32xf32> to vector<128xf32>
    %91 = vector.shape_cast %90 : vector<128xf32> to vector<128x1xf32>
    %cst_45 = arith.constant 3.200000e+01 : f32
    %92 = vector.broadcast %cst_45 : f32 to vector<128x1xf32>
    %93 = arith.divf %91, %92 : vector<128x1xf32>
    %94 = arith.mulf %89, %89 : vector<128x32xf32>
    %cst_46 = arith.constant dense<0.000000e+00> : vector<128xf32>
    %95 = vector.multi_reduction <add>, %94, %cst_46 [1] : vector<128x32xf32> to vector<128xf32>
    %96 = vector.shape_cast %95 : vector<128xf32> to vector<128x1xf32>
    %cst_47 = arith.constant 3.200000e+01 : f32
    %97 = vector.broadcast %cst_47 : f32 to vector<128x1xf32>
    %98 = arith.divf %96, %97 : vector<128x1xf32>
    %99 = arith.mulf %93, %93 : vector<128x1xf32>
    %100 = arith.subf %98, %99 : vector<128x1xf32>
    %cst_48 = arith.constant 0.000000e+00 : f32
    %101 = vector.broadcast %cst_48 : f32 to vector<128x1xf32>
    %102 = arith.maximumf %100, %101 : vector<128x1xf32>
    %103 = vector.broadcast %93 : vector<128x1xf32> to vector<128x32xf32>
    %104 = arith.subf %89, %103 : vector<128x32xf32>
    %cst_49 = arith.constant 9.99999974E-6 : f32
    %105 = vector.broadcast %cst_49 : f32 to vector<128x1xf32>
    %106 = arith.addf %102, %105 : vector<128x1xf32>
    %107 = math.rsqrt %106 : vector<128x1xf32>
    %108 = vector.broadcast %107 : vector<128x1xf32> to vector<128x32xf32>
    %109 = arith.mulf %104, %108 : vector<128x32xf32>
    %c0_50 = arith.constant 0 : index
    %c0_51 = arith.constant 0 : index
    %110 = vector.load %arg9[%c0_50, %c0_51] : memref<1x32xf32, #tpu.memory_space<vmem>>, vector<1x32xf32>
    %111 = vector.broadcast %110 : vector<1x32xf32> to vector<128x32xf32>
    %112 = arith.mulf %109, %111 : vector<128x32xf32>
    %c0_52 = arith.constant 0 : index
    %c0_53 = arith.constant 0 : index
    %113 = vector.load %arg10[%c0_52, %c0_53] : memref<1x32xf32, #tpu.memory_space<vmem>>, vector<1x32xf32>
    %114 = vector.broadcast %113 : vector<1x32xf32> to vector<128x32xf32>
    %115 = arith.addf %112, %114 : vector<128x32xf32>
    %116 = arith.truncf %115 : vector<128x32xf32> to vector<128x32xbf16>
    %c0_54 = arith.constant 0 : index
    %c0_55 = arith.constant 0 : index
    %117 = vector.load %arg11[%c0_54, %c0_55] : memref<32x128xbf16, #tpu.memory_space<vmem>>, vector<32x128xbf16>
    %cst_56 = arith.constant dense<0.000000e+00> : vector<128x128xf32>
    %118 = tpu.matmul %116, %117, %cst_56 {dimension_numbers = #tpu.dot_dimension_numbers<[1], [0], [0], [1], [0, 0, 1, 1], [], []>} : vector<128x32xbf16>, vector<32x128xbf16>, vector<128x128xf32> -> vector<128x128xf32>
    %c0_57 = arith.constant 0 : index
    %c0_58 = arith.constant 0 : index
    %119 = vector.load %arg12[%c0_57, %c0_58] : memref<1x128xf32, #tpu.memory_space<vmem>>, vector<1x128xf32>
    %120 = vector.broadcast %119 : vector<1x128xf32> to vector<128x128xf32>
    %121 = arith.addf %118, %120 : vector<128x128xf32>
    %122 = vector.broadcast %6 : vector<128x1xf32> to vector<128x128xf32>
    %123 = arith.mulf %121, %122 : vector<128x128xf32>
    %124 = vector.shape_cast %123 : vector<128x128xf32> to vector<1x128x128xf32>
    %125 = vector.shape_cast %124 : vector<1x128x128xf32> to vector<128x128xf32>
    %126 = tpu.transpose %125, [1, 0] : vector<128x128xf32> -> vector<128x128xf32>
    %127 = vector.extract_strided_slice %126 {offsets = [0, 0], sizes = [16, 128], strides = [1, 1]} : vector<128x128xf32> to vector<16x128xf32>
    %c0_59 = arith.constant 0 : index
    %c0_60 = arith.constant 0 : index
    %c0_61 = arith.constant 0 : index
    %128 = vector.load %arg13[%c0_59, %c0_60, %c0_61] : memref<1x16x128xf32, #tpu.memory_space<vmem>>, vector<1x16x128xf32>
    %129 = vector.shape_cast %128 : vector<1x16x128xf32> to vector<16x128xf32>
    %130 = vector.shape_cast %127 : vector<16x128xf32> to vector<1x16x128xf32>
    tpu.vector_store %arg13[%c0_59, %c0_60, %c0_61], %130 {strides = array<i32>} : memref<1x16x128xf32, #tpu.memory_space<vmem>>, vector<1x16x128xf32>,
    %131 = vector.broadcast %6 : vector<128x1xf32> to vector<128x32xf32>
    %132 = arith.mulf %115, %131 : vector<128x32xf32>
    %133 = vector.shape_cast %132 : vector<128x32xf32> to vector<1x128x32xf32>
    %134 = arith.sitofp %1 : vector<1x1x1xi32> to vector<1x1x1xf32>
    %cst_62 = arith.constant 1.000000e+00 : f32
    %135 = vector.broadcast %cst_62 : f32 to vector<1x1x1xf32>
    %136 = arith.maximumf %134, %135 : vector<1x1x1xf32>
    %cst_63 = arith.constant dense<0.000000e+00> : vector<1x32xf32>
    %137 = vector.multi_reduction <add>, %133, %cst_63 [1] : vector<1x128x32xf32> to vector<1x32xf32>
    %138 = vector.shape_cast %137 : vector<1x32xf32> to vector<1x1x32xf32>
    %139 = vector.broadcast %136 : vector<1x1x1xf32> to vector<1x1x32xf32>
    %140 = arith.divf %138, %139 : vector<1x1x32xf32>
    %c0_64 = arith.constant 0 : index
    %c0_65 = arith.constant 0 : index
    %c0_66 = arith.constant 0 : index
    %141 = vector.load %arg14[%c0_64, %c0_65, %c0_66] : memref<1x1x32xf32, #tpu.memory_space<vmem>>, vector<1x1x32xf32>
    tpu.vector_store %arg14[%c0_64, %c0_65, %c0_66], %140 {strides = array<i32>} : memref<1x1x32xf32, #tpu.memory_space<vmem>>, vector<1x1x32xf32>,
    return
  }
  func.func @transform_0(%arg0: i32) -> (i32, i32, i32) {
    %c0_i32 = arith.constant 0 : i32
    %c0_i32_0 = arith.constant 0 : i32
    %c0_i32_1 = arith.constant 0 : i32
    return %arg0, %c0_i32, %c0_i32_0 : i32, i32, i32
  }
  func.func @transform_1(%arg0: i32) -> (i32, i32, i32) {
    %c0_i32 = arith.constant 0 : i32
    %c0_i32_0 = arith.constant 0 : i32
    %c0_i32_1 = arith.constant 0 : i32
    return %arg0, %c0_i32, %c0_i32_0 : i32, i32, i32
  }
  func.func @transform_2(%arg0: i32) -> (i32, i32, i32) {
    %c0_i32 = arith.constant 0 : i32
    %c0_i32_0 = arith.constant 0 : i32
    %c0_i32_1 = arith.constant 0 : i32
    %c0_i32_2 = arith.constant 0 : i32
    return %c0_i32, %c0_i32_0, %c0_i32_1 : i32, i32, i32
  }
  func.func @transform_3(%arg0: i32) -> (i32, i32) {
    %c0_i32 = arith.constant 0 : i32
    %c0_i32_0 = arith.constant 0 : i32
    %c0_i32_1 = arith.constant 0 : i32
    return %c0_i32, %c0_i32_0 : i32, i32
  }
  func.func @transform_4(%arg0: i32) -> (i32, i32) {
    %c0_i32 = arith.constant 0 : i32
    %c0_i32_0 = arith.constant 0 : i32
    %c0_i32_1 = arith.constant 0 : i32
    return %c0_i32, %c0_i32_0 : i32, i32
  }
  func.func @transform_5(%arg0: i32) -> (i32, i32) {
    %c0_i32 = arith.constant 0 : i32
    %c0_i32_0 = arith.constant 0 : i32
    %c0_i32_1 = arith.constant 0 : i32
    return %c0_i32, %c0_i32_0 : i32, i32
  }
  func.func @transform_6(%arg0: i32) -> (i32, i32, i32) {
    %c0_i32 = arith.constant 0 : i32
    %c0_i32_0 = arith.constant 0 : i32
    %c0_i32_1 = arith.constant 0 : i32
    %c0_i32_2 = arith.constant 0 : i32
    return %c0_i32, %c0_i32_0, %c0_i32_1 : i32, i32, i32
  }
  func.func @transform_7(%arg0: i32) -> (i32, i32) {
    %c0_i32 = arith.constant 0 : i32
    %c0_i32_0 = arith.constant 0 : i32
    %c0_i32_1 = arith.constant 0 : i32
    return %c0_i32, %c0_i32_0 : i32, i32
  }
  func.func @transform_8(%arg0: i32) -> (i32, i32) {
    %c0_i32 = arith.constant 0 : i32
    %c0_i32_0 = arith.constant 0 : i32
    %c0_i32_1 = arith.constant 0 : i32
    return %c0_i32, %c0_i32_0 : i32, i32
  }
  func.func @transform_9(%arg0: i32) -> (i32, i32) {
    %c0_i32 = arith.constant 0 : i32
    %c0_i32_0 = arith.constant 0 : i32
    %c0_i32_1 = arith.constant 0 : i32
    return %c0_i32, %c0_i32_0 : i32, i32
  }
  func.func @transform_10(%arg0: i32) -> (i32, i32) {
    %c0_i32 = arith.constant 0 : i32
    %c0_i32_0 = arith.constant 0 : i32
    %c0_i32_1 = arith.constant 0 : i32
    return %c0_i32, %c0_i32_0 : i32, i32
  }
  func.func @transform_11(%arg0: i32) -> (i32, i32) {
    %c0_i32 = arith.constant 0 : i32
    %c0_i32_0 = arith.constant 0 : i32
    %c0_i32_1 = arith.constant 0 : i32
    return %c0_i32, %c0_i32_0 : i32, i32
  }
  func.func @transform_12(%arg0: i32) -> (i32, i32, i32) {
    %c0_i32 = arith.constant 0 : i32
    %c0_i32_0 = arith.constant 0 : i32
    %c0_i32_1 = arith.constant 0 : i32
    return %arg0, %c0_i32, %c0_i32_0 : i32, i32, i32
  }
  func.func @transform_13(%arg0: i32) -> (i32, i32, i32) {
    %c0_i32 = arith.constant 0 : i32
    %c0_i32_0 = arith.constant 0 : i32
    %c0_i32_1 = arith.constant 0 : i32
    return %arg0, %c0_i32, %c0_i32_0 : i32, i32, i32
  }
}

</mosaic_0001>

<llo_original>
// kernel: tpu_custom_call.1
$region0: #{tpu_custom_call.1}
  #allocation0 [shape = 'u32[]', space=smem, size = 0x4, offset = 0x4, fixed_abs, tag = 'smem constant byte address 0x4 - core index']
  #allocation1 [shape = 'u32[144,128]{1,0:T(1,128)}', space=vmem, size = 0x12000, scoped, tag = 'internal scratch']
  %s0 = inlined_call_operand.vmem [shape: bf16[2,128,8], index: 0, kind: input, shape index: {}]
  %s1 = inlined_call_operand.vmem [shape: s32[2,1,1], index: 1, kind: input, shape index: {}]
  %s2 = inlined_call_operand.vmem [shape: bf16[3,8,32], index: 2, kind: input, shape index: {}]
  %s3 = inlined_call_operand.vmem [shape: f32[1,32], index: 3, kind: input, shape index: {}]
  %s4 = inlined_call_operand.vmem [shape: f32[1,32], index: 4, kind: input, shape index: {}]
  %s5 = inlined_call_operand.vmem [shape: f32[1,32], index: 5, kind: input, shape index: {}]
  %s6 = inlined_call_operand.vmem [shape: bf16[3,32,32], index: 6, kind: input, shape index: {}]
  %s7 = inlined_call_operand.vmem [shape: f32[1,32], index: 7, kind: input, shape index: {}]
  %s8 = inlined_call_operand.vmem [shape: f32[1,32], index: 8, kind: input, shape index: {}]
  %s9 = inlined_call_operand.vmem [shape: f32[1,32], index: 9, kind: input, shape index: {}]
  %s10 = inlined_call_operand.vmem [shape: bf16[32,128], index: 10, kind: input, shape index: {}]
  %s11 = inlined_call_operand.vmem [shape: f32[1,128], index: 11, kind: input, shape index: {}]
  %s12 = inlined_call_operand.hbm [shape: f32[2,16,128], index: 12, kind: output, shape index: {0}]
  %s13 = inlined_call_operand.hbm [shape: f32[2,1,32], index: 13, kind: output, shape index: {1}]
  %14 = xla_tuple %s12, %s13
  %s15 = sld [smem:[#allocation0]]
  $region89: #{tpu_custom_call.1} parent=0
    _
  %s17 = ssub.s32 1, %s15
  %s18 = scalar_select 0, %s17, %s15
  $region1: #{tpu_custom_call.1} parent=0
    #allocation2 [shape = 'u8[16384]{0}', space=vmem, size = 0x4000, scoped, tag = 'output window, operand 0']
    #allocation3 [shape = 's32[2]{0}', space=sflag, size = 0x8, scoped, tag = 'scoped memory for tpu_custom_call.1']
    #allocation4 [shape = 'u8[1024]{0}', space=vmem, size = 0x400, scoped, tag = 'output window, operand 1']
    #allocation5 [shape = 's32[2]{0}', space=sflag, size = 0x8, scoped, tag = 'scoped memory for tpu_custom_call.1']
    %19 = vsyncpa [#allocation3], 0
    %s20 = scalar_lea.sflag [#allocation3], 1
    %21 = vsyncpa %s20, 0
    %22 = vsyncpa [#allocation5], 0
    %s23 = scalar_lea.sflag [#allocation5], 1
    %24 = vsyncpa %s23, 0
    loop: start=0, step=1, limit=4
    $region2: #{tpu_custom_call.1} parent=1 // loop_pre_header
      _
    $region3: #{tpu_custom_call.1} parent=1 // loop_header
      %s26 = sphi 0, %s30
      %p27 = scmp.ge.s32.totalorder %s26, 4
      %s36 = sphi 0, %s38
      %s39 = sphi 0, %s36
      %s40 = sphi 0, %s39
      %s56 = sphi 0, %s40
      %s62 = sphi 0, %s64
      %s65 = sphi 0, %s62
      %s66 = sphi 0, %s65
      %s82 = sphi 0, %s66
      %s86 = sphi 0, %s86
      %s88 = sphi 0, %s86
      %s89 = sphi 0, %s88
      %s103 = sphi 0, %s89
      %s107 = sphi 0, %s107
      %s109 = sphi 0, %s107
      %s110 = sphi 0, %s109
      %s124 = sphi 0, %s110
      %s128 = sphi 0, %s128
      %s130 = sphi 0, %s128
      %s131 = sphi 0, %s130
      %s145 = sphi 0, %s131
      %s149 = sphi 0, %s149
      %s151 = sphi 0, %s149
      %s152 = sphi 0, %s151
      %s166 = sphi 0, %s152
      %s170 = sphi 0, %s170
      %s172 = sphi 0, %s170
      %s173 = sphi 0, %s172
      %s187 = sphi 0, %s173
      %s191 = sphi 0, %s191
      %s193 = sphi 0, %s191
      %s194 = sphi 0, %s193
      %s208 = sphi 0, %s194
      %s212 = sphi 0, %s212
      %s214 = sphi 0, %s212
      %s215 = sphi 0, %s214
      %s229 = sphi 0, %s215
      %s233 = sphi 0, %s233
      %s235 = sphi 0, %s233
      %s236 = sphi 0, %s235
      %s250 = sphi 0, %s236
      %s254 = sphi 0, %s254
      %s256 = sphi 0, %s254
      %s257 = sphi 0, %s256
      %s271 = sphi 0, %s257
      %s275 = sphi 0, %s275
      %s277 = sphi 0, %s275
      %s278 = sphi 0, %s277
      %s292 = sphi 0, %s278
      %s298 = sphi 0, %s300
      %s301 = sphi 0, %s298
      %s302 = sphi 0, %s301
      %s318 = sphi 0, %s302
      %s324 = sphi 0, %s326
      %s327 = sphi 0, %s324
      %s328 = sphi 0, %s327
      %s344 = sphi 0, %s328
    $region4: #{tpu_custom_call.1} parent=1 // loop_header_branch
      %29 = sbr.rel (%p27) target = $region8
    $region5: #{tpu_custom_call.1} parent=1 // loop_body
      %s31 = ssub.s32 %s26, 1
      %s32 = ssub.s32 %s26, 2
      %s33 = sadd.s32 %s26, 1
      %s34 = ssub.s32 %s26, %s33
      %p35 = scmp.eq.s32.totalorder %s34, 0
      %s37 = sadd.s32 %s36, 1
      %s38 = scalar_select %p35, %s36, %s37
      %p41 = pneg %p35
      %p42 = scmp.eq.s32.totalorder %s26, 1
      %p43 = por %p41, %p42
      %p44 = scmp.ne.s32.totalorder %s36, %s39
      %p45 = scmp.eq.s32.totalorder %s26, 0
      %p46 = por %p44, %p45
      %p47 = scmp.ne.s32.totalorder %s36, %s39
      %p48 = scmp.eq.s32.totalorder %s31, 1
      %p49 = por %p47, %p48
      %p50 = scmp.ne.s32.totalorder %s39, %s40
      %p51 = scmp.eq.s32.totalorder %s31, 0
      %p52 = por %p50, %p51
      %p53 = scmp.ne.s32.totalorder %s39, %s40
      %p54 = scmp.eq.s32.totalorder %s32, 1
      %p55 = por %p53, %p54
      %p57 = scmp.ne.s32.totalorder %s40, %s56
      %p58 = scmp.eq.s32.totalorder %s32, 0
      %p59 = por %p57, %p58
      %s60 = ssub.s32 %s26, %s33
      %p61 = scmp.eq.s32.totalorder %s60, 0
      %s63 = sadd.s32 %s62, 1
      %s64 = scalar_select %p61, %s62, %s63
      %p67 = pneg %p61
      %p68 = scmp.eq.s32.totalorder %s26, 1
      %p69 = por %p67, %p68
      %p70 = scmp.ne.s32.totalorder %s62, %s65
      %p71 = scmp.eq.s32.totalorder %s26, 0
      %p72 = por %p70, %p71
      %p73 = scmp.ne.s32.totalorder %s62, %s65
      %p74 = scmp.eq.s32.totalorder %s31, 1
      %p75 = por %p73, %p74
      %p76 = scmp.ne.s32.totalorder %s65, %s66
      %p77 = scmp.eq.s32.totalorder %s31, 0
      %p78 = por %p76, %p77
      %p79 = scmp.ne.s32.totalorder %s65, %s66
      %p80 = scmp.eq.s32.totalorder %s32, 1
      %p81 = por %p79, %p80
      %p83 = scmp.ne.s32.totalorder %s66, %s82
      %p84 = scmp.eq.s32.totalorder %s32, 0
      %p85 = por %p83, %p84
      %s87 = sadd.s32 %s86, 1
      %p90 = scmp.eq.s32.totalorder %s26, 1
      %p91 = scmp.ne.s32.totalorder %s86, %s88
      %p92 = scmp.eq.s32.totalorder %s26, 0
      %p93 = por %p91, %p92
      %p94 = scmp.ne.s32.totalorder %s86, %s88
      %p95 = scmp.eq.s32.totalorder %s31, 1
      %p96 = por %p94, %p95
      %p97 = scmp.ne.s32.totalorder %s88, %s89
      %p98 = scmp.eq.s32.totalorder %s31, 0
      %p99 = por %p97, %p98
      %p100 = scmp.ne.s32.totalorder %s88, %s89
      %p101 = scmp.eq.s32.totalorder %s32, 1
      %p102 = por %p100, %p101
      %p104 = scmp.ne.s32.totalorder %s89, %s103
      %p105 = scmp.eq.s32.totalorder %s32, 0
      %p106 = por %p104, %p105
      %s108 = sadd.s32 %s107, 1
      %p111 = scmp.eq.s32.totalorder %s26, 1
      %p112 = scmp.ne.s32.totalorder %s107, %s109
      %p113 = scmp.eq.s32.totalorder %s26, 0
      %p114 = por %p112, %p113
      %p115 = scmp.ne.s32.totalorder %s107, %s109
      %p116 = scmp.eq.s32.totalorder %s31, 1
      %p117 = por %p115, %p116
      %p118 = scmp.ne.s32.totalorder %s109, %s110
      %p119 = scmp.eq.s32.totalorder %s31, 0
      %p120 = por %p118, %p119
      %p121 = scmp.ne.s32.totalorder %s109, %s110
      %p122 = scmp.eq.s32.totalorder %s32, 1
      %p123 = por %p121, %p122
      %p125 = scmp.ne.s32.totalorder %s110, %s124
      %p126 = scmp.eq.s32.totalorder %s32, 0
      %p127 = por %p125, %p126
      %s129 = sadd.s32 %s128, 1
      %p132 = scmp.eq.s32.totalorder %s26, 1
      %p133 = scmp.ne.s32.totalorder %s128, %s130
      %p134 = scmp.eq.s32.totalorder %s26, 0
      %p135 = por %p133, %p134
      %p136 = scmp.ne.s32.totalorder %s128, %s130
      %p137 = scmp.eq.s32.totalorder %s31, 1
      %p138 = por %p136, %p137
      %p139 = scmp.ne.s32.totalorder %s130, %s131
      %p140 = scmp.eq.s32.totalorder %s31, 0
      %p141 = por %p139, %p140
      %p142 = scmp.ne.s32.totalorder %s130, %s131
      %p143 = scmp.eq.s32.totalorder %s32, 1
      %p144 = por %p142, %p143
      %p146 = scmp.ne.s32.totalorder %s131, %s145
      %p147 = scmp.eq.s32.totalorder %s32, 0
      %p148 = por %p146, %p147
      %s150 = sadd.s32 %s149, 1
      %p153 = scmp.eq.s32.totalorder %s26, 1
      %p154 = scmp.ne.s32.totalorder %s149, %s151
      %p155 = scmp.eq.s32.totalorder %s26, 0
      %p156 = por %p154, %p155
      %p157 = scmp.ne.s32.totalorder %s149, %s151
      %p158 = scmp.eq.s32.totalorder %s31, 1
      %p159 = por %p157, %p158
      %p160 = scmp.ne.s32.totalorder %s151, %s152
      %p161 = scmp.eq.s32.totalorder %s31, 0
      %p162 = por %p160, %p161
      %p163 = scmp.ne.s32.totalorder %s151, %s152
      %p164 = scmp.eq.s32.totalorder %s32, 1
      %p165 = por %p163, %p164
      %p167 = scmp.ne.s32.totalorder %s152, %s166
      %p168 = scmp.eq.s32.totalorder %s32, 0
      %p169 = por %p167, %p168
      %s171 = sadd.s32 %s170, 1
      %p174 = scmp.eq.s32.totalorder %s26, 1
      %p175 = scmp.ne.s32.totalorder %s170, %s172
      %p176 = scmp.eq.s32.totalorder %s26, 0
      %p177 = por %p175, %p176
      %p178 = scmp.ne.s32.totalorder %s170, %s172
      %p179 = scmp.eq.s32.totalorder %s31, 1
      %p180 = por %p178, %p179
      %p181 = scmp.ne.s32.totalorder %s172, %s173
      %p182 = scmp.eq.s32.totalorder %s31, 0
      %p183 = por %p181, %p182
      %p184 = scmp.ne.s32.totalorder %s172, %s173
      %p185 = scmp.eq.s32.totalorder %s32, 1
      %p186 = por %p184, %p185
      %p188 = scmp.ne.s32.totalorder %s173, %s187
      %p189 = scmp.eq.s32.totalorder %s32, 0
      %p190 = por %p188, %p189
      %s192 = sadd.s32 %s191, 1
      %p195 = scmp.eq.s32.totalorder %s26, 1
      %p196 = scmp.ne.s32.totalorder %s191, %s193
      %p197 = scmp.eq.s32.totalorder %s26, 0
      %p198 = por %p196, %p197
      %p199 = scmp.ne.s32.totalorder %s191, %s193
      %p200 = scmp.eq.s32.totalorder %s31, 1
      %p201 = por %p199, %p200
      %p202 = scmp.ne.s32.totalorder %s193, %s194
      %p203 = scmp.eq.s32.totalorder %s31, 0
      %p204 = por %p202, %p203
      %p205 = scmp.ne.s32.totalorder %s193, %s194
      %p206 = scmp.eq.s32.totalorder %s32, 1
      %p207 = por %p205, %p206
      %p209 = scmp.ne.s32.totalorder %s194, %s208
      %p210 = scmp.eq.s32.totalorder %s32, 0
      %p211 = por %p209, %p210
      %s213 = sadd.s32 %s212, 1
      %p216 = scmp.eq.s32.totalorder %s26, 1
      %p217 = scmp.ne.s32.totalorder %s212, %s214
      %p218 = scmp.eq.s32.totalorder %s26, 0
      %p219 = por %p217, %p218
      %p220 = scmp.ne.s32.totalorder %s212, %s214
      %p221 = scmp.eq.s32.totalorder %s31, 1
      %p222 = por %p220, %p221
      %p223 = scmp.ne.s32.totalorder %s214, %s215
      %p224 = scmp.eq.s32.totalorder %s31, 0
      %p225 = por %p223, %p224
      %p226 = scmp.ne.s32.totalorder %s214, %s215
      %p227 = scmp.eq.s32.totalorder %s32, 1
      %p228 = por %p226, %p227
      %p230 = scmp.ne.s32.totalorder %s215, %s229
      %p231 = scmp.eq.s32.totalorder %s32, 0
      %p232 = por %p230, %p231
      %s234 = sadd.s32 %s233, 1
      %p237 = scmp.eq.s32.totalorder %s26, 1
      %p238 = scmp.ne.s32.totalorder %s233, %s235
      %p239 = scmp.eq.s32.totalorder %s26, 0
      %p240 = por %p238, %p239
      %p241 = scmp.ne.s32.totalorder %s233, %s235
      %p242 = scmp.eq.s32.totalorder %s31, 1
      %p243 = por %p241, %p242
      %p244 = scmp.ne.s32.totalorder %s235, %s236
      %p245 = scmp.eq.s32.totalorder %s31, 0
      %p246 = por %p244, %p245
      %p247 = scmp.ne.s32.totalorder %s235, %s236
      %p248 = scmp.eq.s32.totalorder %s32, 1
      %p249 = por %p247, %p248
      %p251 = scmp.ne.s32.totalorder %s236, %s250
      %p252 = scmp.eq.s32.totalorder %s32, 0
      %p253 = por %p251, %p252
      %s255 = sadd.s32 %s254, 1
      %p258 = scmp.eq.s32.totalorder %s26, 1
      %p259 = scmp.ne.s32.totalorder %s254, %s256
      %p260 = scmp.eq.s32.totalorder %s26, 0
      %p261 = por %p259, %p260
      %p262 = scmp.ne.s32.totalorder %s254, %s256
      %p263 = scmp.eq.s32.totalorder %s31, 1
      %p264 = por %p262, %p263
      %p265 = scmp.ne.s32.totalorder %s256, %s257
      %p266 = scmp.eq.s32.totalorder %s31, 0
      %p267 = por %p265, %p266
      %p268 = scmp.ne.s32.totalorder %s256, %s257
      %p269 = scmp.eq.s32.totalorder %s32, 1
      %p270 = por %p268, %p269
      %p272 = scmp.ne.s32.totalorder %s257, %s271
      %p273 = scmp.eq.s32.totalorder %s32, 0
      %p274 = por %p272, %p273
      %s276 = sadd.s32 %s275, 1
      %p279 = scmp.eq.s32.totalorder %s26, 1
      %p280 = scmp.ne.s32.totalorder %s275, %s277
      %p281 = scmp.eq.s32.totalorder %s26, 0
      %p282 = por %p280, %p281
      %p283 = scmp.ne.s32.totalorder %s275, %s277
      %p284 = scmp.eq.s32.totalorder %s31, 1
      %p285 = por %p283, %p284
      %p286 = scmp.ne.s32.totalorder %s277, %s278
      %p287 = scmp.eq.s32.totalorder %s31, 0
      %p288 = por %p286, %p287
      %p289 = scmp.ne.s32.totalorder %s277, %s278
      %p290 = scmp.eq.s32.totalorder %s32, 1
      %p291 = por %p289, %p290
      %p293 = scmp.ne.s32.totalorder %s278, %s292
      %p294 = scmp.eq.s32.totalorder %s32, 0
      %p295 = por %p293, %p294
      %s296 = ssub.s32 %s26, %s33
      %p297 = scmp.eq.s32.totalorder %s296, 0
      %s299 = sadd.s32 %s298, 1
      %s300 = scalar_select %p297, %s298, %s299
      %p303 = pneg %p297
      %p304 = scmp.eq.s32.totalorder %s26, 1
      %p305 = por %p303, %p304
      %p306 = scmp.ne.s32.totalorder %s298, %s301
      %p307 = scmp.eq.s32.totalorder %s26, 0
      %p308 = por %p306, %p307
      %p309 = scmp.ne.s32.totalorder %s298, %s301
      %p310 = scmp.eq.s32.totalorder %s31, 1
      %p311 = por %p309, %p310
      %p312 = scmp.ne.s32.totalorder %s301, %s302
      %p313 = scmp.eq.s32.totalorder %s31, 0
      %p314 = por %p312, %p313
      %p315 = scmp.ne.s32.totalorder %s301, %s302
      %p316 = scmp.eq.s32.totalorder %s32, 1
      %p317 = por %p315, %p316
      %p319 = scmp.ne.s32.totalorder %s302, %s318
      %p320 = scmp.eq.s32.totalorder %s32, 0
      %p321 = por %p319, %p320
      %s322 = ssub.s32 %s26, %s33
      %p323 = scmp.eq.s32.totalorder %s322, 0
      %s325 = sadd.s32 %s324, 1
      %s326 = scalar_select %p323, %s324, %s325
      %p329 = pneg %p323
      %p330 = scmp.eq.s32.totalorder %s26, 1
      %p331 = por %p329, %p330
      %p332 = scmp.ne.s32.totalorder %s324, %s327
      %p333 = scmp.eq.s32.totalorder %s26, 0
      %p334 = por %p332, %p333
      %p335 = scmp.ne.s32.totalorder %s324, %s327
      %p336 = scmp.eq.s32.totalorder %s31, 1
      %p337 = por %p335, %p336
      %p338 = scmp.ne.s32.totalorder %s327, %s328
      %p339 = scmp.eq.s32.totalorder %s31, 0
      %p340 = por %p338, %p339
      %p341 = scmp.ne.s32.totalorder %s327, %s328
      %p342 = scmp.eq.s32.totalorder %s32, 1
      %p343 = por %p341, %p342
      %p345 = scmp.ne.s32.totalorder %s328, %s344
      %p346 = scmp.eq.s32.totalorder %s32, 0
      %p347 = por %p345, %p346
      %p348 = scmp.le.s32.totalorder 1, %s26
      %p349 = scmp.lt.s32.totalorder %s26, 3
      %p350 = pnand %p348, %p349
      %p351 = pneg %p350
      // Predicated region
      $region9: #{tpu_custom_call.1} parent=5 // pred_check
        _
      $region10: #{tpu_custom_call.1} parent=5 // pred_check_branch
        %353 = sbr.rel (%p350) target = $region12
      $region11: #{tpu_custom_call.1} parent=5 // pred_region
        %s354 = ssub.s32 %s26, 1
        // Predicated region
        $region13: #{tpu_custom_call.1} parent=11 // pred_check
          %p355 = pneg %p99
        $region14: #{tpu_custom_call.1} parent=11 // pred_check_branch
          %357 = sbr.rel (%p355) target = $region16
        $region15: #{tpu_custom_call.1} parent=11 // pred_region
          _
        $region16: #{tpu_custom_call.1} parent=11 // pred_fallthru
          _
        // Predicated region
        $region17: #{tpu_custom_call.1} parent=11 // pred_check
          %p358 = pneg %p120
        $region18: #{tpu_custom_call.1} parent=11 // pred_check_branch
          %360 = sbr.rel (%p358) target = $region20
        $region19: #{tpu_custom_call.1} parent=11 // pred_region
          _
        $region20: #{tpu_custom_call.1} parent=11 // pred_fallthru
          _
        // Predicated region
        $region21: #{tpu_custom_call.1} parent=11 // pred_check
          %p361 = pneg %p141
        $region22: #{tpu_custom_call.1} parent=11 // pred_check_branch
          %363 = sbr.rel (%p361) target = $region24
        $region23: #{tpu_custom_call.1} parent=11 // pred_region
          _
        $region24: #{tpu_custom_call.1} parent=11 // pred_fallthru
          _
        // Predicated region
        $region25: #{tpu_custom_call.1} parent=11 // pred_check
          %p364 = pneg %p162
        $region26: #{tpu_custom_call.1} parent=11 // pred_check_branch
          %366 = sbr.rel (%p364) target = $region28
        $region27: #{tpu_custom_call.1} parent=11 // pred_region
          _
        $region28: #{tpu_custom_call.1} parent=11 // pred_fallthru
          _
        // Predicated region
        $region29: #{tpu_custom_call.1} parent=11 // pred_check
          %p367 = pneg %p183
        $region30: #{tpu_custom_call.1} parent=11 // pred_check_branch
          %369 = sbr.rel (%p367) target = $region32
        $region31: #{tpu_custom_call.1} parent=11 // pred_region
          _
        $region32: #{tpu_custom_call.1} parent=11 // pred_fallthru
          _
        // Predicated region
        $region33: #{tpu_custom_call.1} parent=11 // pred_check
          %p370 = pneg %p204
        $region34: #{tpu_custom_call.1} parent=11 // pred_check_branch
          %372 = sbr.rel (%p370) target = $region36
        $region35: #{tpu_custom_call.1} parent=11 // pred_region
          _
        $region36: #{tpu_custom_call.1} parent=11 // pred_fallthru
          _
        // Predicated region
        $region37: #{tpu_custom_call.1} parent=11 // pred_check
          %p373 = pneg %p225
        $region38: #{tpu_custom_call.1} parent=11 // pred_check_branch
          %375 = sbr.rel (%p373) target = $region40
        $region39: #{tpu_custom_call.1} parent=11 // pred_region
          _
        $region40: #{tpu_custom_call.1} parent=11 // pred_fallthru
          _
        // Predicated region
        $region41: #{tpu_custom_call.1} parent=11 // pred_check
          %p376 = pneg %p246
        $region42: #{tpu_custom_call.1} parent=11 // pred_check_branch
          %378 = sbr.rel (%p376) target = $region44
        $region43: #{tpu_custom_call.1} parent=11 // pred_region
          _
        $region44: #{tpu_custom_call.1} parent=11 // pred_fallthru
          _
        // Predicated region
        $region45: #{tpu_custom_call.1} parent=11 // pred_check
          %p379 = pneg %p267
        $region46: #{tpu_custom_call.1} parent=11 // pred_check_branch
          %381 = sbr.rel (%p379) target = $region48
        $region47: #{tpu_custom_call.1} parent=11 // pred_region
          _
        $region48: #{tpu_custom_call.1} parent=11 // pred_fallthru
          _
        // Predicated region
        $region49: #{tpu_custom_call.1} parent=11 // pred_check
          %p382 = pneg %p288
        $region50: #{tpu_custom_call.1} parent=11 // pred_check_branch
          %384 = sbr.rel (%p382) target = $region52
        $region51: #{tpu_custom_call.1} parent=11 // pred_region
          _
        $region52: #{tpu_custom_call.1} parent=11 // pred_fallthru
          _
      $region12: #{tpu_custom_call.1} parent=5 // pred_fallthru
        _
      %p385 = scmp.lt.s32.totalorder %s26, 2
      // Predicated region
      $region53: #{tpu_custom_call.1} parent=5 // pred_check
        %p386 = pneg %p385
      $region54: #{tpu_custom_call.1} parent=5 // pred_check_branch
        %388 = sbr.rel (%p386) target = $region56
      $region55: #{tpu_custom_call.1} parent=5 // pred_region
        // Predicated region
        $region57: #{tpu_custom_call.1} parent=55 // pred_check
          %p389 = pneg %p46
        $region58: #{tpu_custom_call.1} parent=55 // pred_check_branch
          %391 = sbr.rel (%p389) target = $region60
        $region59: #{tpu_custom_call.1} parent=55 // pred_region
          %p392 = scmp.lt.s32.totalorder %s26, 1
          %s393 = scalar_select %p392, %s26, 1
          %s394 = smul.addr %s393, 16
          %s395 = smul.addr %s394, 4
          %s396 = scalar_lea.vmem %s0, %s395
        $region60: #{tpu_custom_call.1} parent=55 // pred_fallthru
          _
        // Predicated region
        $region61: #{tpu_custom_call.1} parent=55 // pred_check
          %p397 = pneg %p72
        $region62: #{tpu_custom_call.1} parent=55 // pred_check_branch
          %399 = sbr.rel (%p397) target = $region64
        $region63: #{tpu_custom_call.1} parent=55 // pred_region
          %p400 = scmp.lt.s32.totalorder %s26, 1
          %s401 = scalar_select %p400, %s26, 1
          %s402 = scalar_lea.vmem %s1, %s401
        $region64: #{tpu_custom_call.1} parent=55 // pred_fallthru
          _
      $region56: #{tpu_custom_call.1} parent=5 // pred_fallthru
        _
      %p403 = scmp.le.s32.totalorder 1, %s26
      %p404 = scmp.lt.s32.totalorder %s26, 3
      %p405 = pnand %p403, %p404
      %p406 = pneg %p405
      // Predicated region
      $region65: #{tpu_custom_call.1} parent=5 // pred_check
        _
      $region66: #{tpu_custom_call.1} parent=5 // pred_check_branch
        %408 = sbr.rel (%p405) target = $region68
      $region67: #{tpu_custom_call.1} parent=5 // pred_region
        %s409 = ssub.s32 %s26, 1
        %p410 = scmp.lt.s32.totalorder %s31, 1
        %s411 = scalar_select %p410, %s31, 1
        %s412 = smul.addr %s411, 16
        %s413 = smul.addr %s412, 4
        %s414 = scalar_lea.vmem %s0, %s413
        %p415 = pneg %p52
        %p416 = pneg %p49
        %p417 = scmp.lt.s32.totalorder %s31, 1
        %s418 = scalar_select %p417, %s31, 1
        %s419 = scalar_lea.vmem %s1, %s418
        %p420 = pneg %p78
        %p421 = pneg %p75
        %p422 = pneg %p99
        %p423 = pneg %p96
        %p424 = pneg %p120
        %p425 = pneg %p117
        %p426 = pneg %p141
        %p427 = pneg %p138
        %p428 = pneg %p162
        %p429 = pneg %p159
        %p430 = pneg %p183
        %p431 = pneg %p180
        %p432 = pneg %p204
        %p433 = pneg %p201
        %p434 = pneg %p225
        %p435 = pneg %p222
        %p436 = pneg %p246
        %p437 = pneg %p243
        %p438 = pneg %p267
        %p439 = pneg %p264
        %p440 = pneg %p288
        %p441 = pneg %p285
        %p442 = pneg %p314
        %p443 = pneg %p311
        %s444 = sand.u32 %s301, 1
        %s445 = scalar_lea.sflag [#allocation3], %s444
        %s446 = sand.u32 %s301, 1
        %s447 = smul.addr %s446, 16
        %s448 = scalar_lea.vmem [#allocation2], %s447
        %p449 = pneg %p340
        %p450 = pneg %p337
        %s451 = sand.u32 %s327, 1
        %s452 = scalar_lea.sflag [#allocation5], %s451
        %s453 = sand.u32 %s327, 1
        %s454 = scalar_lea.vmem [#allocation4], %s453
        %p455 = scmp.lt.s32.totalorder %s31, 1
        %s456 = scalar_select %p455, %s31, 1
        %s457 = smul.addr %s456, 16
        %s458 = smul.addr %s457, 4
        %s459 = scalar_lea.vmem %s0, %s458
        %p460 = scmp.lt.s32.totalorder %s31, 1
        %s461 = scalar_select %p460, %s31, 1
        %s462 = scalar_lea.vmem %s1, %s461
        %v464 = vlaneseq
        %v465 = vshrl.u32 %v464, 7
        %v466 = vadd.s32 %v465, 8
        %v467 = vadd.s32 %v465, 16
        %v468 = vadd.s32 %v465, 24
        %v469 = vadd.s32 %v465, 32
        %v470 = vadd.s32 %v465, 40
        %v471 = vadd.s32 %v465, 48
        %v472 = vadd.s32 %v465, 56
        %v473 = vadd.s32 %v465, 64
        %v474 = vadd.s32 %v465, 72
        %v475 = vadd.s32 %v465, 80
        %v476 = vadd.s32 %v465, 88
        %v477 = vadd.s32 %v465, 96
        %v478 = vadd.s32 %v465, 104
        %v479 = vadd.s32 %v465, 112
        %v480 = vadd.s32 %v465, 120
        %v481 = vld [vmem:[%s462] sm:$0x1]
        %v482 = vlaneseq
        %v483 = vshrl.u32 %v482, 7
        %v484 = vsub.s32 0, %v483
        %v485 = vrot.slane %v481, %v484
        %vm486 = vcmp.lt.s32.totalorder %v465, %v485
        %vm487 = vcmp.lt.s32.totalorder %v466, %v485
        %vm488 = vcmp.lt.s32.totalorder %v467, %v485
        %vm489 = vcmp.lt.s32.totalorder %v468, %v485
        %vm490 = vcmp.lt.s32.totalorder %v469, %v485
        %vm491 = vcmp.lt.s32.totalorder %v470, %v485
        %vm492 = vcmp.lt.s32.totalorder %v471, %v485
        %vm493 = vcmp.lt.s32.totalorder %v472, %v485
        %vm494 = vcmp.lt.s32.totalorder %v473, %v485
        %vm495 = vcmp.lt.s32.totalorder %v474, %v485
        %vm496 = vcmp.lt.s32.totalorder %v475, %v485
        %vm497 = vcmp.lt.s32.totalorder %v476, %v485
        %vm498 = vcmp.lt.s32.totalorder %v477, %v485
        %vm499 = vcmp.lt.s32.totalorder %v478, %v485
        %vm500 = vcmp.lt.s32.totalorder %v479, %v485
        %vm501 = vcmp.lt.s32.totalorder %v480, %v485
        %v502 = vsel %vm486, 1, 0
        %v503 = vsel %vm487, 1, 0
        %v504 = vsel %vm488, 1, 0
        %v505 = vsel %vm489, 1, 0
        %v506 = vsel %vm490, 1, 0
        %v507 = vsel %vm491, 1, 0
        %v508 = vsel %vm492, 1, 0
        %v509 = vsel %vm493, 1, 0
        %v510 = vsel %vm494, 1, 0
        %v511 = vsel %vm495, 1, 0
        %v512 = vsel %vm496, 1, 0
        %v513 = vsel %vm497, 1, 0
        %v514 = vsel %vm498, 1, 0
        %v515 = vsel %vm499, 1, 0
        %v516 = vsel %vm500, 1, 0
        %v517 = vsel %vm501, 1, 0
        %v518 = vcvt.s32.f32 %v502
        %v519 = vcvt.s32.f32 %v503
        %v520 = vcvt.s32.f32 %v504
        %v521 = vcvt.s32.f32 %v505
        %v522 = vcvt.s32.f32 %v506
        %v523 = vcvt.s32.f32 %v507
        %v524 = vcvt.s32.f32 %v508
        %v525 = vcvt.s32.f32 %v509
        %v526 = vcvt.s32.f32 %v510
        %v527 = vcvt.s32.f32 %v511
        %v528 = vcvt.s32.f32 %v512
        %v529 = vcvt.s32.f32 %v513
        %v530 = vcvt.s32.f32 %v514
        %v531 = vcvt.s32.f32 %v515
        %v532 = vcvt.s32.f32 %v516
        %v533 = vcvt.s32.f32 %v517
        %vm534 = vcmp.gt.s32.totalorder %v465, 0
        %vm535 = vcmp.gt.s32.totalorder %v466, 0
        %vm536 = vcmp.gt.s32.totalorder %v467, 0
        %vm537 = vcmp.gt.s32.totalorder %v468, 0
        %vm538 = vcmp.gt.s32.totalorder %v469, 0
        %vm539 = vcmp.gt.s32.totalorder %v470, 0
        %vm540 = vcmp.gt.s32.totalorder %v471, 0
        %vm541 = vcmp.gt.s32.totalorder %v472, 0
        %vm542 = vcmp.gt.s32.totalorder %v473, 0
        %vm543 = vcmp.gt.s32.totalorder %v474, 0
        %vm544 = vcmp.gt.s32.totalorder %v475, 0
        %vm545 = vcmp.gt.s32.totalorder %v476, 0
        %vm546 = vcmp.gt.s32.totalorder %v477, 0
        %vm547 = vcmp.gt.s32.totalorder %v478, 0
        %vm548 = vcmp.gt.s32.totalorder %v479, 0
        %vm549 = vcmp.gt.s32.totalorder %v480, 0
        %v550 = vsel %vm534, 1, 0
        %v551 = vsel %vm535, 1, 0
        %v552 = vsel %vm536, 1, 0
        %v553 = vsel %vm537, 1, 0
        %v554 = vsel %vm538, 1, 0
        %v555 = vsel %vm539, 1, 0
        %v556 = vsel %vm540, 1, 0
        %v557 = vsel %vm541, 1, 0
        %v558 = vsel %vm542, 1, 0
        %v559 = vsel %vm543, 1, 0
        %v560 = vsel %vm544, 1, 0
        %v561 = vsel %vm545, 1, 0
        %v562 = vsel %vm546, 1, 0
        %v563 = vsel %vm547, 1, 0
        %v564 = vsel %vm548, 1, 0
        %v565 = vsel %vm549, 1, 0
        %v566 = vcvt.s32.f32 %v550
        %v567 = vcvt.s32.f32 %v551
        %v568 = vcvt.s32.f32 %v552
        %v569 = vcvt.s32.f32 %v553
        %v570 = vcvt.s32.f32 %v554
        %v571 = vcvt.s32.f32 %v555
        %v572 = vcvt.s32.f32 %v556
        %v573 = vcvt.s32.f32 %v557
        %v574 = vcvt.s32.f32 %v558
        %v575 = vcvt.s32.f32 %v559
        %v576 = vcvt.s32.f32 %v560
        %v577 = vcvt.s32.f32 %v561
        %v578 = vcvt.s32.f32 %v562
        %v579 = vcvt.s32.f32 %v563
        %v580 = vcvt.s32.f32 %v564
        %v581 = vcvt.s32.f32 %v565
        %vm582 = vcmp.lt.s32.totalorder %v465, 15
        %vm583 = vcmp.lt.s32.totalorder %v466, 15
        %vm584 = vcmp.lt.s32.totalorder %v467, 15
        %vm585 = vcmp.lt.s32.totalorder %v468, 15
        %vm586 = vcmp.lt.s32.totalorder %v469, 15
        %vm587 = vcmp.lt.s32.totalorder %v470, 15
        %vm588 = vcmp.lt.s32.totalorder %v471, 15
        %vm589 = vcmp.lt.s32.totalorder %v472, 15
        %vm590 = vcmp.lt.s32.totalorder %v473, 15
        %vm591 = vcmp.lt.s32.totalorder %v474, 15
        %vm592 = vcmp.lt.s32.totalorder %v475, 15
        %vm593 = vcmp.lt.s32.totalorder %v476, 15
        %vm594 = vcmp.lt.s32.totalorder %v477, 15
        %vm595 = vcmp.lt.s32.totalorder %v478, 15
        %vm596 = vcmp.lt.s32.totalorder %v479, 15
        %vm597 = vcmp.lt.s32.totalorder %v480, 15
        %v598 = vsel %vm582, 1, 0
        %v599 = vsel %vm583, 1, 0
        %v600 = vsel %vm584, 1, 0
        %v601 = vsel %vm585, 1, 0
        %v602 = vsel %vm586, 1, 0
        %v603 = vsel %vm587, 1, 0
        %v604 = vsel %vm588, 1, 0
        %v605 = vsel %vm589, 1, 0
        %v606 = vsel %vm590, 1, 0
        %v607 = vsel %vm591, 1, 0
        %v608 = vsel %vm592, 1, 0
        %v609 = vsel %vm593, 1, 0
        %v610 = vsel %vm594, 1, 0
        %v611 = vsel %vm595, 1, 0
        %v612 = vsel %vm596, 1, 0
        %v613 = vsel %vm597, 1, 0
        %v614 = vcvt.s32.f32 %v598
        %v615 = vcvt.s32.f32 %v599
        %v616 = vcvt.s32.f32 %v600
        %v617 = vcvt.s32.f32 %v601
        %v618 = vcvt.s32.f32 %v602
        %v619 = vcvt.s32.f32 %v603
        %v620 = vcvt.s32.f32 %v604
        %v621 = vcvt.s32.f32 %v605
        %v622 = vcvt.s32.f32 %v606
        %v623 = vcvt.s32.f32 %v607
        %v624 = vcvt.s32.f32 %v608
        %v625 = vcvt.s32.f32 %v609
        %v626 = vcvt.s32.f32 %v610
        %v627 = vcvt.s32.f32 %v611
        %v628 = vcvt.s32.f32 %v612
        %v629 = vcvt.s32.f32 %v613
        %v630 = vld [vmem:[%s459] sm:$0xf]
        %v631 = vld [vmem:[%s459 + $0x4] sm:$0xf]
        %v632 = vld [vmem:[%s459 + $0x8] sm:$0xf]
        %v633 = vld [vmem:[%s459 + $0xc] sm:$0xf]
        %v634 = vld [vmem:[%s459 + $0x10] sm:$0xf]
        %v635 = vld [vmem:[%s459 + $0x14] sm:$0xf]
        %v636 = vld [vmem:[%s459 + $0x18] sm:$0xf]
        %v637 = vld [vmem:[%s459 + $0x1c] sm:$0xf]
        %v638 = vld [vmem:[%s459 + $0x20] sm:$0xf]
        %v639 = vld [vmem:[%s459 + $0x24] sm:$0xf]
        %v640 = vld [vmem:[%s459 + $0x28] sm:$0xf]
        %v641 = vld [vmem:[%s459 + $0x2c] sm:$0xf]
        %v642 = vld [vmem:[%s459 + $0x30] sm:$0xf]
        %v643 = vld [vmem:[%s459 + $0x34] sm:$0xf]
        %v644 = vld [vmem:[%s459 + $0x38] sm:$0xf]
        %v645 = vld [vmem:[%s459 + $0x3c] sm:$0xf]
        %v646 = vld [vmem:[%s2] sm:$0xf]
        %v663 = vunpack.c.l.b16 %v630
        %v664 = vunpack.c.l.b16 %v631
        %v665 = vunpack.c.l.b16 %v632
        %v666 = vunpack.c.l.b16 %v633
        %v667 = vunpack.c.l.b16 %v634
        %v668 = vunpack.c.l.b16 %v635
        %v669 = vunpack.c.l.b16 %v636
        %v670 = vunpack.c.l.b16 %v637
        %v671 = vunpack.c.l.b16 %v638
        %v672 = vunpack.c.l.b16 %v639
        %v673 = vunpack.c.l.b16 %v640
        %v674 = vunpack.c.l.b16 %v641
        %v675 = vunpack.c.l.b16 %v642
        %v676 = vunpack.c.l.b16 %v643
        %v677 = vunpack.c.l.b16 %v644
        %v678 = vunpack.c.l.b16 %v645
        %v679 = vpack.c.b16 %v664, %v663
        %v680 = vpack.c.b16 %v666, %v665
        %v681 = vpack.c.b16 %v668, %v667
        %v682 = vpack.c.b16 %v670, %v669
        %v683 = vpack.c.b16 %v672, %v671
        %v684 = vpack.c.b16 %v674, %v673
        %v685 = vpack.c.b16 %v676, %v675
        %v686 = vpack.c.b16 %v678, %v677
        %vm687 = vcmask 64512
        %v689 = vsel %vm687, %v679, 0
        %v692 = vsel %vm687, %v680, 0
        %v695 = vsel %vm687, %v681, 0
        %v698 = vsel %vm687, %v682, 0
        %v701 = vsel %vm687, %v683, 0
        %v704 = vsel %vm687, %v684, 0
        %v707 = vsel %vm687, %v685, 0
        %v710 = vsel %vm687, %v686, 0
        %vm712 = vcmask 1043456
        %v714 = vsel %vm712, %v646, 0
        %716 = vmatprep.subr.bf16.mxu0 0
        %717 = vmatpush1.bf16.msra.mxu0 %v714
        %718 = vmatprep.subr.bf16.mxu0 0
        %719 = vmatpush1.bf16.msra.mxu0 0
        %720 = vmatprep.subr.bf16.mxu0 0
        %721 = vmatpush1.bf16.msra.mxu0 0
        %722 = vmatprep.subr.bf16.mxu0 0
        %723 = vmatpush1.bf16.msra.mxu0 0
        %724 = vmatprep.subr.bf16.mxu0 0
        %725 = vmatpush1.bf16.msra.mxu0 0
        %726 = vmatprep.subr.bf16.mxu0 0
        %727 = vmatpush1.bf16.msra.mxu0 0
        %728 = vmatprep.subr.bf16.mxu0 0
        %729 = vmatpush1.bf16.msra.mxu0 0
        %730 = vmatprep.subr.bf16.mxu0 0
        %731 = vmatpush1.bf16.msra.mxu0 0
        %732 = vmatprep.subr.bf16.mxu0 0
        %733 = vmatpush1.bf16.msra.mxu0 0
        %734 = vmatprep.subr.bf16.mxu0 0
        %735 = vmatpush1.bf16.msra.mxu0 0
        %736 = vmatprep.subr.bf16.mxu0 0
        %737 = vmatpush1.bf16.msra.mxu0 0
        %738 = vmatprep.subr.bf16.mxu0 0
        %739 = vmatpush1.bf16.msra.mxu0 0
        %740 = vmatprep.subr.bf16.mxu0 0
        %741 = vmatpush1.bf16.msra.mxu0 0
        %742 = vmatprep.subr.bf16.mxu0 0
        %743 = vmatpush1.bf16.msra.mxu0 0
        %744 = vmatprep.subr.bf16.mxu0 0
        %745 = vmatpush1.bf16.msra.mxu0 0
        %746 = vmatprep.subr.bf16.mxu0 0
        %747 = vmatpush1.bf16.msra.mxu0 0
        %748 = vmatprep.mubr.bf16.mxu0 0
        %749 = vmatmul.mubr.bf16.gmra.mrb[0].mxu0 %v689
        %v750 = vpop.f32.mrb[0].mxu0
        %v751 = vadd.f32 0.0, %v750
        %v752 = vpop.f32.mrb[0].mxu0
        %v753 = vpop.f32.mrb[0].mxu0
        %v754 = vadd.f32 0.0, %v753
        %v755 = vpop.f32.mrb[0].mxu0
        %756 = vmatprep.mubr.bf16.mxu0 0
        %757 = vmatmul.mubr.bf16.gmra.mrb[0].mxu0 %v692
        %v758 = vpop.f32.mrb[0].mxu0
        %v759 = vadd.f32 0.0, %v758
        %v760 = vpop.f32.mrb[0].mxu0
        %v761 = vpop.f32.mrb[0].mxu0
        %v762 = vadd.f32 0.0, %v761
        %v763 = vpop.f32.mrb[0].mxu0
        %764 = vmatprep.mubr.bf16.mxu0 0
        %765 = vmatmul.mubr.bf16.gmra.mrb[0].mxu0 %v695
        %v766 = vpop.f32.mrb[0].mxu0
        %v767 = vadd.f32 0.0, %v766
        %v768 = vpop.f32.mrb[0].mxu0
        %v769 = vpop.f32.mrb[0].mxu0
        %v770 = vadd.f32 0.0, %v769
        %v771 = vpop.f32.mrb[0].mxu0
        %772 = vmatprep.mubr.bf16.mxu0 0
        %773 = vmatmul.mubr.bf16.gmra.mrb[0].mxu0 %v698
        %v774 = vpop.f32.mrb[0].mxu0
        %v775 = vadd.f32 0.0, %v774
        %v776 = vpop.f32.mrb[0].mxu0
        %v777 = vpop.f32.mrb[0].mxu0
        %v778 = vadd.f32 0.0, %v777
        %v779 = vpop.f32.mrb[0].mxu0
        %780 = vmatprep.mubr.bf16.mxu0 0
        %781 = vmatmul.mubr.bf16.gmra.mrb[0].mxu0 %v701
        %v782 = vpop.f32.mrb[0].mxu0
        %v783 = vadd.f32 0.0, %v782
        %v784 = vpop.f32.mrb[0].mxu0
        %v785 = vpop.f32.mrb[0].mxu0
        %v786 = vadd.f32 0.0, %v785
        %v787 = vpop.f32.mrb[0].mxu0
        %788 = vmatprep.mubr.bf16.mxu0 0
        %789 = vmatmul.mubr.bf16.gmra.mrb[0].mxu0 %v704
        %v790 = vpop.f32.mrb[0].mxu0
        %v791 = vadd.f32 0.0, %v790
        %v792 = vpop.f32.mrb[0].mxu0
        %v793 = vpop.f32.mrb[0].mxu0
        %v794 = vadd.f32 0.0, %v793
        %v795 = vpop.f32.mrb[0].mxu0
        %796 = vmatprep.mubr.bf16.mxu0 0
        %797 = vmatmul.mubr.bf16.gmra.mrb[0].mxu0 %v707
        %v798 = vpop.f32.mrb[0].mxu0
        %v799 = vadd.f32 0.0, %v798
        %v800 = vpop.f32.mrb[0].mxu0
        %v801 = vpop.f32.mrb[0].mxu0
        %v802 = vadd.f32 0.0, %v801
        %v803 = vpop.f32.mrb[0].mxu0
        %804 = vmatprep.mubr.bf16.mxu0 0
        %805 = vmatmul.mubr.bf16.gmra.mrb[0].mxu0 %v710
        %v806 = vpop.f32.mrb[0].mxu0
        %v807 = vadd.f32 0.0, %v806
        %v808 = vpop.f32.mrb[0].mxu0
        %v809 = vpop.f32.mrb[0].mxu0
        %v810 = vadd.f32 0.0, %v809
        %v811 = vpop.f32.mrb[0].mxu0
        %812 = vdwg.mxu0
        %s813 = scalar_lea.vmem %s2, 4
        %v814 = vld [vmem:[%s813] sm:$0xf]
        %v816 = vsel %vm712, %v814, 0
        %818 = vmatprep.subr.bf16.mxu0 0
        %819 = vmatpush1.bf16.msra.mxu0 %v816
        %820 = vmatprep.subr.bf16.mxu0 0
        %821 = vmatpush1.bf16.msra.mxu0 0
        %822 = vmatprep.subr.bf16.mxu0 0
        %823 = vmatpush1.bf16.msra.mxu0 0
        %824 = vmatprep.subr.bf16.mxu0 0
        %825 = vmatpush1.bf16.msra.mxu0 0
        %826 = vmatprep.subr.bf16.mxu0 0
        %827 = vmatpush1.bf16.msra.mxu0 0
        %828 = vmatprep.subr.bf16.mxu0 0
        %829 = vmatpush1.bf16.msra.mxu0 0
        %830 = vmatprep.subr.bf16.mxu0 0
        %831 = vmatpush1.bf16.msra.mxu0 0
        %832 = vmatprep.subr.bf16.mxu0 0
        %833 = vmatpush1.bf16.msra.mxu0 0
        %834 = vmatprep.subr.bf16.mxu0 0
        %835 = vmatpush1.bf16.msra.mxu0 0
        %836 = vmatprep.subr.bf16.mxu0 0
        %837 = vmatpush1.bf16.msra.mxu0 0
        %838 = vmatprep.subr.bf16.mxu0 0
        %839 = vmatpush1.bf16.msra.mxu0 0
        %840 = vmatprep.subr.bf16.mxu0 0
        %841 = vmatpush1.bf16.msra.mxu0 0
        %842 = vmatprep.subr.bf16.mxu0 0
        %843 = vmatpush1.bf16.msra.mxu0 0
        %844 = vmatprep.subr.bf16.mxu0 0
        %845 = vmatpush1.bf16.msra.mxu0 0
        %846 = vmatprep.subr.bf16.mxu0 0
        %847 = vmatpush1.bf16.msra.mxu0 0
        %848 = vmatprep.subr.bf16.mxu0 0
        %849 = vmatpush1.bf16.msra.mxu0 0
        %850 = vmatprep.mubr.bf16.mxu0 0
        %851 = vmatmul.mubr.bf16.gmra.mrb[0].mxu0 %v689
        %v852 = vpop.f32.mrb[0].mxu0
        %v853 = vadd.f32 0.0, %v852
        %v854 = vpop.f32.mrb[0].mxu0
        %v855 = vpop.f32.mrb[0].mxu0
        %v856 = vadd.f32 0.0, %v855
        %v857 = vpop.f32.mrb[0].mxu0
        %858 = vmatprep.mubr.bf16.mxu0 0
        %859 = vmatmul.mubr.bf16.gmra.mrb[0].mxu0 %v692
        %v860 = vpop.f32.mrb[0].mxu0
        %v861 = vadd.f32 0.0, %v860
        %v862 = vpop.f32.mrb[0].mxu0
        %v863 = vpop.f32.mrb[0].mxu0
        %v864 = vadd.f32 0.0, %v863
        %v865 = vpop.f32.mrb[0].mxu0
        %866 = vmatprep.mubr.bf16.mxu0 0
        %867 = vmatmul.mubr.bf16.gmra.mrb[0].mxu0 %v695
        %v868 = vpop.f32.mrb[0].mxu0
        %v869 = vadd.f32 0.0, %v868
        %v870 = vpop.f32.mrb[0].mxu0
        %v871 = vpop.f32.mrb[0].mxu0
        %v872 = vadd.f32 0.0, %v871
        %v873 = vpop.f32.mrb[0].mxu0
        %874 = vmatprep.mubr.bf16.mxu0 0
        %875 = vmatmul.mubr.bf16.gmra.mrb[0].mxu0 %v698
        %v876 = vpop.f32.mrb[0].mxu0
        %v877 = vadd.f32 0.0, %v876
        %v878 = vpop.f32.mrb[0].mxu0
        %v879 = vpop.f32.mrb[0].mxu0
        %v880 = vadd.f32 0.0, %v879
        %v881 = vpop.f32.mrb[0].mxu0
        %882 = vmatprep.mubr.bf16.mxu0 0
        %883 = vmatmul.mubr.bf16.gmra.mrb[0].mxu0 %v701
        %v884 = vpop.f32.mrb[0].mxu0
        %v885 = vadd.f32 0.0, %v884
        %v886 = vpop.f32.mrb[0].mxu0
        %v887 = vpop.f32.mrb[0].mxu0
        %v888 = vadd.f32 0.0, %v887
        %v889 = vpop.f32.mrb[0].mxu0
        %890 = vmatprep.mubr.bf16.mxu0 0
        %891 = vmatmul.mubr.bf16.gmra.mrb[0].mxu0 %v704
        %v892 = vpop.f32.mrb[0].mxu0
        %v893 = vadd.f32 0.0, %v892
        %v894 = vpop.f32.mrb[0].mxu0
        %v895 = vpop.f32.mrb[0].mxu0
        %v896 = vadd.f32 0.0, %v895
        %v897 = vpop.f32.mrb[0].mxu0
        %898 = vmatprep.mubr.bf16.mxu0 0
        %899 = vmatmul.mubr.bf16.gmra.mrb[0].mxu0 %v707
        %v900 = vpop.f32.mrb[0].mxu0
        %v901 = vadd.f32 0.0, %v900
        %v902 = vpop.f32.mrb[0].mxu0
        %v903 = vpop.f32.mrb[0].mxu0
        %v904 = vadd.f32 0.0, %v903
        %v905 = vpop.f32.mrb[0].mxu0
        %906 = vmatprep.mubr.bf16.mxu0 0
        %907 = vmatmul.mubr.bf16.gmra.mrb[0].mxu0 %v710
        %v908 = vpop.f32.mrb[0].mxu0
        %v909 = vadd.f32 0.0, %v908
        %v910 = vpop.f32.mrb[0].mxu0
        %v911 = vpop.f32.mrb[0].mxu0
        %v912 = vadd.f32 0.0, %v911
        %v913 = vpop.f32.mrb[0].mxu0
        %914 = vdwg.mxu0
        %s915 = scalar_lea.vmem %s2, 8
        %v916 = vld [vmem:[%s915] sm:$0xf]
        %v918 = vsel %vm712, %v916, 0
        %920 = vmatprep.subr.bf16.mxu0 0
        %921 = vmatpush1.bf16.msra.mxu0 %v918
        %922 = vmatprep.subr.bf16.mxu0 0
        %923 = vmatpush1.bf16.msra.mxu0 0
        %924 = vmatprep.subr.bf16.mxu0 0
        %925 = vmatpush1.bf16.msra.mxu0 0
        %926 = vmatprep.subr.bf16.mxu0 0
        %927 = vmatpush1.bf16.msra.mxu0 0
        %928 = vmatprep.subr.bf16.mxu0 0
        %929 = vmatpush1.bf16.msra.mxu0 0
        %930 = vmatprep.subr.bf16.mxu0 0
        %931 = vmatpush1.bf16.msra.mxu0 0
        %932 = vmatprep.subr.bf16.mxu0 0
        %933 = vmatpush1.bf16.msra.mxu0 0
        %934 = vmatprep.subr.bf16.mxu0 0
        %935 = vmatpush1.bf16.msra.mxu0 0
        %936 = vmatprep.subr.bf16.mxu0 0
        %937 = vmatpush1.bf16.msra.mxu0 0
        %938 = vmatprep.subr.bf16.mxu0 0
        %939 = vmatpush1.bf16.msra.mxu0 0
        %940 = vmatprep.subr.bf16.mxu0 0
        %941 = vmatpush1.bf16.msra.mxu0 0
        %942 = vmatprep.subr.bf16.mxu0 0
        %943 = vmatpush1.bf16.msra.mxu0 0
        %944 = vmatprep.subr.bf16.mxu0 0
        %945 = vmatpush1.bf16.msra.mxu0 0
        %946 = vmatprep.subr.bf16.mxu0 0
        %947 = vmatpush1.bf16.msra.mxu0 0
        %948 = vmatprep.subr.bf16.mxu0 0
        %949 = vmatpush1.bf16.msra.mxu0 0
        %950 = vmatprep.subr.bf16.mxu0 0
        %951 = vmatpush1.bf16.msra.mxu0 0
        %952 = vmatprep.mubr.bf16.mxu0 0
        %953 = vmatmul.mubr.bf16.gmra.mrb[0].mxu0 %v689
        %v954 = vpop.f32.mrb[0].mxu0
        %v955 = vadd.f32 0.0, %v954
        %v956 = vpop.f32.mrb[0].mxu0
        %v957 = vpop.f32.mrb[0].mxu0
        %v958 = vadd.f32 0.0, %v957
        %v959 = vpop.f32.mrb[0].mxu0
        %960 = vmatprep.mubr.bf16.mxu0 0
        %961 = vmatmul.mubr.bf16.gmra.mrb[0].mxu0 %v692
        %v962 = vpop.f32.mrb[0].mxu0
        %v963 = vadd.f32 0.0, %v962
        %v964 = vpop.f32.mrb[0].mxu0
        %v965 = vpop.f32.mrb[0].mxu0
        %v966 = vadd.f32 0.0, %v965
        %v967 = vpop.f32.mrb[0].mxu0
        %968 = vmatprep.mubr.bf16.mxu0 0
        %969 = vmatmul.mubr.bf16.gmra.mrb[0].mxu0 %v695
        %v970 = vpop.f32.mrb[0].mxu0
        %v971 = vadd.f32 0.0, %v970
        %v972 = vpop.f32.mrb[0].mxu0
        %v973 = vpop.f32.mrb[0].mxu0
        %v974 = vadd.f32 0.0, %v973
        %v975 = vpop.f32.mrb[0].mxu0
        %976 = vmatprep.mubr.bf16.mxu0 0
        %977 = vmatmul.mubr.bf16.gmra.mrb[0].mxu0 %v698
        %v978 = vpop.f32.mrb[0].mxu0
        %v979 = vadd.f32 0.0, %v978
        %v980 = vpop.f32.mrb[0].mxu0
        %v981 = vpop.f32.mrb[0].mxu0
        %v982 = vadd.f32 0.0, %v981
        %v983 = vpop.f32.mrb[0].mxu0
        %984 = vmatprep.mubr.bf16.mxu0 0
        %985 = vmatmul.mubr.bf16.gmra.mrb[0].mxu0 %v701
        %v986 = vpop.f32.mrb[0].mxu0
        %v987 = vadd.f32 0.0, %v986
        %v988 = vpop.f32.mrb[0].mxu0
        %v989 = vpop.f32.mrb[0].mxu0
        %v990 = vadd.f32 0.0, %v989
        %v991 = vpop.f32.mrb[0].mxu0
        %992 = vmatprep.mubr.bf16.mxu0 0
        %993 = vmatmul.mubr.bf16.gmra.mrb[0].mxu0 %v704
        %v994 = vpop.f32.mrb[0].mxu0
        %v995 = vadd.f32 0.0, %v994
        %v996 = vpop.f32.mrb[0].mxu0
        %v997 = vpop.f32.mrb[0].mxu0
        %v998 = vadd.f32 0.0, %v997
        %v999 = vpop.f32.mrb[0].mxu0
        %1000 = vmatprep.mubr.bf16.mxu0 0
        %1001 = vmatmul.mubr.bf16.gmra.mrb[0].mxu0 %v707
        %v1002 = vpop.f32.mrb[0].mxu0
        %v1003 = vadd.f32 0.0, %v1002
        %v1004 = vpop.f32.mrb[0].mxu0
        %v1005 = vpop.f32.mrb[0].mxu0
        %v1006 = vadd.f32 0.0, %v1005
        %v1007 = vpop.f32.mrb[0].mxu0
        %1008 = vmatprep.mubr.bf16.mxu0 0
        %1009 = vmatmul.mubr.bf16.gmra.mrb[0].mxu0 %v710
        %v1010 = vpop.f32.mrb[0].mxu0
        %v1011 = vadd.f32 0.0, %v1010
        %v1012 = vpop.f32.mrb[0].mxu0
        %v1013 = vpop.f32.mrb[0].mxu0
        %v1014 = vadd.f32 0.0, %v1013
        %v1015 = vpop.f32.mrb[0].mxu0
        %1016 = vdwg.mxu0
        %v1017 = vrot.slane %v751, 7
        %v1018 = vrot.slane %v754, 7
        %v1019 = vrot.slane %v759, 7
        %v1020 = vrot.slane %v762, 7
        %v1021 = vrot.slane %v767, 7
        %v1022 = vrot.slane %v770, 7
        %v1023 = vrot.slane %v775, 7
        %v1024 = vrot.slane %v778, 7
        %v1025 = vrot.slane %v783, 7
        %v1026 = vrot.slane %v786, 7
        %v1027 = vrot.slane %v791, 7
        %v1028 = vrot.slane %v794, 7
        %v1029 = vrot.slane %v799, 7
        %v1030 = vrot.slane %v802, 7
        %v1031 = vrot.slane %v807, 7
        %v1032 = vrot.slane %v810, 7
        %vm1033 = vcmp.lt.s32.totalorder %v465, 1
        %v1034 = vsel %vm1033, %v1031, %v1032
        %v1035 = vsel %vm1033, %v1030, %v1031
        %v1036 = vsel %vm1033, %v1029, %v1030
        %v1037 = vsel %vm1033, %v1028, %v1029
        %v1038 = vsel %vm1033, %v1027, %v1028
        %v1039 = vsel %vm1033, %v1026, %v1027
        %v1040 = vsel %vm1033, %v1025, %v1026
        %v1041 = vsel %vm1033, %v1024, %v1025
        %v1042 = vsel %vm1033, %v1023, %v1024
        %v1043 = vsel %vm1033, %v1022, %v1023
        %v1044 = vsel %vm1033, %v1021, %v1022
        %v1045 = vsel %vm1033, %v1020, %v1021
        %v1046 = vsel %vm1033, %v1019, %v1020
        %v1047 = vsel %vm1033, %v1018, %v1019
        %v1048 = vsel %vm1033, %v1017, %v1018
        %v1049 = vsel %vm1033, %v1032, %v1017
        %v1050 = vmul.f32 %v1049, %v566
        %v1051 = vmul.f32 %v1048, %v567
        %v1052 = vmul.f32 %v1047, %v568
        %v1053 = vmul.f32 %v1046, %v569
        %v1054 = vmul.f32 %v1045, %v570
        %v1055 = vmul.f32 %v1044, %v571
        %v1056 = vmul.f32 %v1043, %v572
        %v1057 = vmul.f32 %v1042, %v573
        %v1058 = vmul.f32 %v1041, %v574
        %v1059 = vmul.f32 %v1040, %v575
        %v1060 = vmul.f32 %v1039, %v576
        %v1061 = vmul.f32 %v1038, %v577
        %v1062 = vmul.f32 %v1037, %v578
        %v1063 = vmul.f32 %v1036, %v579
        %v1064 = vmul.f32 %v1035, %v580
        %v1065 = vmul.f32 %v1034, %v581
        %v1066 = vadd.f32 %v1050, %v853
        %v1067 = vadd.f32 %v1051, %v856
        %v1068 = vadd.f32 %v1052, %v861
        %v1069 = vadd.f32 %v1053, %v864
        %v1070 = vadd.f32 %v1054, %v869
        %v1071 = vadd.f32 %v1055, %v872
        %v1072 = vadd.f32 %v1056, %v877
        %v1073 = vadd.f32 %v1057, %v880
        %v1074 = vadd.f32 %v1058, %v885
        %v1075 = vadd.f32 %v1059, %v888
        %v1076 = vadd.f32 %v1060, %v893
        %v1077 = vadd.f32 %v1061, %v896
        %v1078 = vadd.f32 %v1062, %v901
        %v1079 = vadd.f32 %v1063, %v904
        %v1080 = vadd.f32 %v1064, %v909
        %v1081 = vadd.f32 %v1065, %v912
        %v1082 = vrot.slane %v955, 1
        %v1083 = vrot.slane %v958, 1
        %v1084 = vrot.slane %v963, 1
        %v1085 = vrot.slane %v966, 1
        %v1086 = vrot.slane %v971, 1
        %v1087 = vrot.slane %v974, 1
        %v1088 = vrot.slane %v979, 1
        %v1089 = vrot.slane %v982, 1
        %v1090 = vrot.slane %v987, 1
        %v1091 = vrot.slane %v990, 1
        %v1092 = vrot.slane %v995, 1
        %v1093 = vrot.slane %v998, 1
        %v1094 = vrot.slane %v1003, 1
        %v1095 = vrot.slane %v1006, 1
        %v1096 = vrot.slane %v1011, 1
        %v1097 = vrot.slane %v1014, 1
        %vm1098 = vcmp.lt.s32.totalorder %v465, 7
        %v1099 = vsel %vm1098, %v1096, %v1097
        %v1100 = vsel %vm1098, %v1095, %v1096
        %v1101 = vsel %vm1098, %v1094, %v1095
        %v1102 = vsel %vm1098, %v1093, %v1094
        %v1103 = vsel %vm1098, %v1092, %v1093
        %v1104 = vsel %vm1098, %v1091, %v1092
        %v1105 = vsel %vm1098, %v1090, %v1091
        %v1106 = vsel %vm1098, %v1089, %v1090
        %v1107 = vsel %vm1098, %v1088, %v1089
        %v1108 = vsel %vm1098, %v1087, %v1088
        %v1109 = vsel %vm1098, %v1086, %v1087
        %v1110 = vsel %vm1098, %v1085, %v1086
        %v1111 = vsel %vm1098, %v1084, %v1085
        %v1112 = vsel %vm1098, %v1083, %v1084
        %v1113 = vsel %vm1098, %v1082, %v1083
        %v1114 = vsel %vm1098, %v1097, %v1082
        %v1115 = vmul.f32 %v1113, %v614
        %v1116 = vmul.f32 %v1112, %v615
        %v1117 = vmul.f32 %v1111, %v616
        %v1118 = vmul.f32 %v1110, %v617
        %v1119 = vmul.f32 %v1109, %v618
        %v1120 = vmul.f32 %v1108, %v619
        %v1121 = vmul.f32 %v1107, %v620
        %v1122 = vmul.f32 %v1106, %v621
        %v1123 = vmul.f32 %v1105, %v622
        %v1124 = vmul.f32 %v1104, %v623
        %v1125 = vmul.f32 %v1103, %v624
        %v1126 = vmul.f32 %v1102, %v625
        %v1127 = vmul.f32 %v1101, %v626
        %v1128 = vmul.f32 %v1100, %v627
        %v1129 = vmul.f32 %v1099, %v628
        %v1130 = vmul.f32 %v1114, %v629
        %v1131 = vadd.f32 %v1066, %v1115
        %v1132 = vadd.f32 %v1067, %v1116
        %v1133 = vadd.f32 %v1068, %v1117
        %v1134 = vadd.f32 %v1069, %v1118
        %v1135 = vadd.f32 %v1070, %v1119
        %v1136 = vadd.f32 %v1071, %v1120
        %v1137 = vadd.f32 %v1072, %v1121
        %v1138 = vadd.f32 %v1073, %v1122
        %v1139 = vadd.f32 %v1074, %v1123
        %v1140 = vadd.f32 %v1075, %v1124
        %v1141 = vadd.f32 %v1076, %v1125
        %v1142 = vadd.f32 %v1077, %v1126
        %v1143 = vadd.f32 %v1078, %v1127
        %v1144 = vadd.f32 %v1079, %v1128
        %v1145 = vadd.f32 %v1080, %v1129
        %v1146 = vadd.f32 %v1081, %v1130
        %v1147 = vld [vmem:[%s3] sm:$0x1]
        %v1149 = vlaneseq
        %v1150 = vshrl.u32 %v1149, 7
        %v1151 = vsub.s32 0, %v1150
        %v1152 = vrot.slane %v1147, %v1151
        %v1154 = vadd.f32 %v1131, %v1152
        %v1155 = vadd.f32 %v1132, %v1152
        %v1156 = vadd.f32 %v1133, %v1152
        %v1157 = vadd.f32 %v1134, %v1152
        %v1158 = vadd.f32 %v1135, %v1152
        %v1159 = vadd.f32 %v1136, %v1152
        %v1160 = vadd.f32 %v1137, %v1152
        %v1161 = vadd.f32 %v1138, %v1152
        %v1162 = vadd.f32 %v1139, %v1152
        %v1163 = vadd.f32 %v1140, %v1152
        %v1164 = vadd.f32 %v1141, %v1152
        %v1165 = vadd.f32 %v1142, %v1152
        %v1166 = vadd.f32 %v1143, %v1152
        %v1167 = vadd.f32 %v1144, %v1152
        %v1168 = vadd.f32 %v1145, %v1152
        %v1169 = vadd.f32 %v1146, %v1152
        %v1170 = vmax.f32 %v1154, 0.0
        %v1171 = vmax.f32 %v1155, 0.0
        %v1172 = vmax.f32 %v1156, 0.0
        %v1173 = vmax.f32 %v1157, 0.0
        %v1174 = vmax.f32 %v1158, 0.0
        %v1175 = vmax.f32 %v1159, 0.0
        %v1176 = vmax.f32 %v1160, 0.0
        %v1177 = vmax.f32 %v1161, 0.0
        %v1178 = vmax.f32 %v1162, 0.0
        %v1179 = vmax.f32 %v1163, 0.0
        %v1180 = vmax.f32 %v1164, 0.0
        %v1181 = vmax.f32 %v1165, 0.0
        %v1182 = vmax.f32 %v1166, 0.0
        %v1183 = vmax.f32 %v1167, 0.0
        %v1184 = vmax.f32 %v1168, 0.0
        %v1185 = vmax.f32 %v1169, 0.0
        %vm1186 = vcmask 261120
        %v1187 = vsel %vm1186, %v1170, 0.0
        %1188 = vadd.xlane.f32.xlu0 %v1187
        %v1189 = vpop.xlane.xlu0 %1188
        %v1190 = vsel %vm1186, %v1171, 0.0
        %1191 = vadd.xlane.f32.xlu0 %v1190
        %v1192 = vpop.xlane.xlu0 %1191
        %v1193 = vsel %vm1186, %v1172, 0.0
        %1194 = vadd.xlane.f32.xlu0 %v1193
        %v1195 = vpop.xlane.xlu0 %1194
        %v1196 = vsel %vm1186, %v1173, 0.0
        %1197 = vadd.xlane.f32.xlu0 %v1196
        %v1198 = vpop.xlane.xlu0 %1197
        %v1199 = vsel %vm1186, %v1174, 0.0
        %1200 = vadd.xlane.f32.xlu0 %v1199
        %v1201 = vpop.xlane.xlu0 %1200
        %v1202 = vsel %vm1186, %v1175, 0.0
        %1203 = vadd.xlane.f32.xlu0 %v1202
        %v1204 = vpop.xlane.xlu0 %1203
        %v1205 = vsel %vm1186, %v1176, 0.0
        %1206 = vadd.xlane.f32.xlu0 %v1205
        %v1207 = vpop.xlane.xlu0 %1206
        %v1208 = vsel %vm1186, %v1177, 0.0
        %1209 = vadd.xlane.f32.xlu0 %v1208
        %v1210 = vpop.xlane.xlu0 %1209
        %v1211 = vsel %vm1186, %v1178, 0.0
        %1212 = vadd.xlane.f32.xlu0 %v1211
        %v1213 = vpop.xlane.xlu0 %1212
        %v1214 = vsel %vm1186, %v1179, 0.0
        %1215 = vadd.xlane.f32.xlu0 %v1214
        %v1216 = vpop.xlane.xlu0 %1215
        %v1217 = vsel %vm1186, %v1180, 0.0
        %1218 = vadd.xlane.f32.xlu0 %v1217
        %v1219 = vpop.xlane.xlu0 %1218
        %v1220 = vsel %vm1186, %v1181, 0.0
        %1221 = vadd.xlane.f32.xlu0 %v1220
        %v1222 = vpop.xlane.xlu0 %1221
        %v1223 = vsel %vm1186, %v1182, 0.0
        %1224 = vadd.xlane.f32.xlu0 %v1223
        %v1225 = vpop.xlane.xlu0 %1224
        %v1226 = vsel %vm1186, %v1183, 0.0
        %1227 = vadd.xlane.f32.xlu0 %v1226
        %v1228 = vpop.xlane.xlu0 %1227
        %v1229 = vsel %vm1186, %v1184, 0.0
        %1230 = vadd.xlane.f32.xlu0 %v1229
        %v1231 = vpop.xlane.xlu0 %1230
        %v1232 = vsel %vm1186, %v1185, 0.0
        %1233 = vadd.xlane.f32.xlu0 %v1232
        %v1234 = vpop.xlane.xlu0 %1233
        %v1235 = vrcp.pop 32.0
        %v1236 = vmul.f32 %v1189, %v1235
        %v1237 = vmul.f32 %v1192, %v1235
        %v1238 = vmul.f32 %v1195, %v1235
        %v1239 = vmul.f32 %v1198, %v1235
        %v1240 = vmul.f32 %v1201, %v1235
        %v1241 = vmul.f32 %v1204, %v1235
        %v1242 = vmul.f32 %v1207, %v1235
        %v1243 = vmul.f32 %v1210, %v1235
        %v1244 = vmul.f32 %v1213, %v1235
        %v1245 = vmul.f32 %v1216, %v1235
        %v1246 = vmul.f32 %v1219, %v1235
        %v1247 = vmul.f32 %v1222, %v1235
        %v1248 = vmul.f32 %v1225, %v1235
        %v1249 = vmul.f32 %v1228, %v1235
        %v1250 = vmul.f32 %v1231, %v1235
        %v1251 = vmul.f32 %v1234, %v1235
        %v1252 = vmul.f32 %v1170, %v1170
        %v1253 = vmul.f32 %v1171, %v1171
        %v1254 = vmul.f32 %v1172, %v1172
        %v1255 = vmul.f32 %v1173, %v1173
        %v1256 = vmul.f32 %v1174, %v1174
        %v1257 = vmul.f32 %v1175, %v1175
        %v1258 = vmul.f32 %v1176, %v1176
        %v1259 = vmul.f32 %v1177, %v1177
        %v1260 = vmul.f32 %v1178, %v1178
        %v1261 = vmul.f32 %v1179, %v1179
        %v1262 = vmul.f32 %v1180, %v1180
        %v1263 = vmul.f32 %v1181, %v1181
        %v1264 = vmul.f32 %v1182, %v1182
        %v1265 = vmul.f32 %v1183, %v1183
        %v1266 = vmul.f32 %v1184, %v1184
        %v1267 = vmul.f32 %v1185, %v1185
        %v1268 = vsel %vm1186, %v1252, 0.0
        %1269 = vadd.xlane.f32.xlu0 %v1268
        %v1270 = vpop.xlane.xlu0 %1269
        %v1271 = vsel %vm1186, %v1253, 0.0
        %1272 = vadd.xlane.f32.xlu0 %v1271
        %v1273 = vpop.xlane.xlu0 %1272
        %v1274 = vsel %vm1186, %v1254, 0.0
        %1275 = vadd.xlane.f32.xlu0 %v1274
        %v1276 = vpop.xlane.xlu0 %1275
        %v1277 = vsel %vm1186, %v1255, 0.0
        %1278 = vadd.xlane.f32.xlu0 %v1277
        %v1279 = vpop.xlane.xlu0 %1278
        %v1280 = vsel %vm1186, %v1256, 0.0
        %1281 = vadd.xlane.f32.xlu0 %v1280
        %v1282 = vpop.xlane.xlu0 %1281
        %v1283 = vsel %vm1186, %v1257, 0.0
        %1284 = vadd.xlane.f32.xlu0 %v1283
        %v1285 = vpop.xlane.xlu0 %1284
        %v1286 = vsel %vm1186, %v1258, 0.0
        %1287 = vadd.xlane.f32.xlu0 %v1286
        %v1288 = vpop.xlane.xlu0 %1287
        %v1289 = vsel %vm1186, %v1259, 0.0
        %1290 = vadd.xlane.f32.xlu0 %v1289
        %v1291 = vpop.xlane.xlu0 %1290
        %v1292 = vsel %vm1186, %v1260, 0.0
        %1293 = vadd.xlane.f32.xlu0 %v1292
        %v1294 = vpop.xlane.xlu0 %1293
        %v1295 = vsel %vm1186, %v1261, 0.0
        %1296 = vadd.xlane.f32.xlu0 %v1295
        %v1297 = vpop.xlane.xlu0 %1296
        %v1298 = vsel %vm1186, %v1262, 0.0
        %1299 = vadd.xlane.f32.xlu0 %v1298
        %v1300 = vpop.xlane.xlu0 %1299
        %v1301 = vsel %vm1186, %v1263, 0.0
        %1302 = vadd.xlane.f32.xlu0 %v1301
        %v1303 = vpop.xlane.xlu0 %1302
        %v1304 = vsel %vm1186, %v1264, 0.0
        %1305 = vadd.xlane.f32.xlu0 %v1304
        %v1306 = vpop.xlane.xlu0 %1305
        %v1307 = vsel %vm1186, %v1265, 0.0
        %1308 = vadd.xlane.f32.xlu0 %v1307
        %v1309 = vpop.xlane.xlu0 %1308
        %v1310 = vsel %vm1186, %v1266, 0.0
        %1311 = vadd.xlane.f32.xlu0 %v1310
        %v1312 = vpop.xlane.xlu0 %1311
        %v1313 = vsel %vm1186, %v1267, 0.0
        %1314 = vadd.xlane.f32.xlu0 %v1313
        %v1315 = vpop.xlane.xlu0 %1314
        %v1316 = vmul.f32 %v1270, %v1235
        %v1317 = vmul.f32 %v1273, %v1235
        %v1318 = vmul.f32 %v1276, %v1235
        %v1319 = vmul.f32 %v1279, %v1235
        %v1320 = vmul.f32 %v1282, %v1235
        %v1321 = vmul.f32 %v1285, %v1235
        %v1322 = vmul.f32 %v1288, %v1235
        %v1323 = vmul.f32 %v1291, %v1235
        %v1324 = vmul.f32 %v1294, %v1235
        %v1325 = vmul.f32 %v1297, %v1235
        %v1326 = vmul.f32 %v1300, %v1235
        %v1327 = vmul.f32 %v1303, %v1235
        %v1328 = vmul.f32 %v1306, %v1235
        %v1329 = vmul.f32 %v1309, %v1235
        %v1330 = vmul.f32 %v1312, %v1235
        %v1331 = vmul.f32 %v1315, %v1235
        %v1332 = vmul.f32 %v1236, %v1236
        %v1333 = vmul.f32 %v1237, %v1237
        %v1334 = vmul.f32 %v1238, %v1238
        %v1335 = vmul.f32 %v1239, %v1239
        %v1336 = vmul.f32 %v1240, %v1240
        %v1337 = vmul.f32 %v1241, %v1241
        %v1338 = vmul.f32 %v1242, %v1242
        %v1339 = vmul.f32 %v1243, %v1243
        %v1340 = vmul.f32 %v1244, %v1244
        %v1341 = vmul.f32 %v1245, %v1245
        %v1342 = vmul.f32 %v1246, %v1246
        %v1343 = vmul.f32 %v1247, %v1247
        %v1344 = vmul.f32 %v1248, %v1248
        %v1345 = vmul.f32 %v1249, %v1249
        %v1346 = vmul.f32 %v1250, %v1250
        %v1347 = vmul.f32 %v1251, %v1251
        %v1348 = vsub.f32 %v1316, %v1332
        %v1349 = vsub.f32 %v1317, %v1333
        %v1350 = vsub.f32 %v1318, %v1334
        %v1351 = vsub.f32 %v1319, %v1335
        %v1352 = vsub.f32 %v1320, %v1336
        %v1353 = vsub.f32 %v1321, %v1337
        %v1354 = vsub.f32 %v1322, %v1338
        %v1355 = vsub.f32 %v1323, %v1339
        %v1356 = vsub.f32 %v1324, %v1340
        %v1357 = vsub.f32 %v1325, %v1341
        %v1358 = vsub.f32 %v1326, %v1342
        %v1359 = vsub.f32 %v1327, %v1343
        %v1360 = vsub.f32 %v1328, %v1344
        %v1361 = vsub.f32 %v1329, %v1345
        %v1362 = vsub.f32 %v1330, %v1346
        %v1363 = vsub.f32 %v1331, %v1347
        %v1364 = vmax.f32 %v1348, 0.0
        %v1365 = vmax.f32 %v1349, 0.0
        %v1366 = vmax.f32 %v1350, 0.0
        %v1367 = vmax.f32 %v1351, 0.0
        %v1368 = vmax.f32 %v1352, 0.0
        %v1369 = vmax.f32 %v1353, 0.0
        %v1370 = vmax.f32 %v1354, 0.0
        %v1371 = vmax.f32 %v1355, 0.0
        %v1372 = vmax.f32 %v1356, 0.0
        %v1373 = vmax.f32 %v1357, 0.0
        %v1374 = vmax.f32 %v1358, 0.0
        %v1375 = vmax.f32 %v1359, 0.0
        %v1376 = vmax.f32 %v1360, 0.0
        %v1377 = vmax.f32 %v1361, 0.0
        %v1378 = vmax.f32 %v1362, 0.0
        %v1379 = vmax.f32 %v1363, 0.0
        %v1380 = vsub.f32 %v1170, %v1236
        %v1381 = vsub.f32 %v1171, %v1237
        %v1382 = vsub.f32 %v1172, %v1238
        %v1383 = vsub.f32 %v1173, %v1239
        %v1384 = vsub.f32 %v1174, %v1240
        %v1385 = vsub.f32 %v1175, %v1241
        %v1386 = vsub.f32 %v1176, %v1242
        %v1387 = vsub.f32 %v1177, %v1243
        %v1388 = vsub.f32 %v1178, %v1244
        %v1389 = vsub.f32 %v1179, %v1245
        %v1390 = vsub.f32 %v1180, %v1246
        %v1391 = vsub.f32 %v1181, %v1247
        %v1392 = vsub.f32 %v1182, %v1248
        %v1393 = vsub.f32 %v1183, %v1249
        %v1394 = vsub.f32 %v1184, %v1250
        %v1395 = vsub.f32 %v1185, %v1251
        %v1396 = vadd.f32 %v1364, 1e-05
        %v1397 = vadd.f32 %v1365, 1e-05
        %v1398 = vadd.f32 %v1366, 1e-05
        %v1399 = vadd.f32 %v1367, 1e-05
        %v1400 = vadd.f32 %v1368, 1e-05
        %v1401 = vadd.f32 %v1369, 1e-05
        %v1402 = vadd.f32 %v1370, 1e-05
        %v1403 = vadd.f32 %v1371, 1e-05
        %v1404 = vadd.f32 %v1372, 1e-05
        %v1405 = vadd.f32 %v1373, 1e-05
        %v1406 = vadd.f32 %v1374, 1e-05
        %v1407 = vadd.f32 %v1375, 1e-05
        %v1408 = vadd.f32 %v1376, 1e-05
        %v1409 = vadd.f32 %v1377, 1e-05
        %v1410 = vadd.f32 %v1378, 1e-05
        %v1411 = vadd.f32 %v1379, 1e-05
        %v1412 = vrsqrt.pop %v1396
        %v1413 = vrsqrt.pop %v1397
        %v1414 = vrsqrt.pop %v1398
        %v1415 = vrsqrt.pop %v1399
        %v1416 = vrsqrt.pop %v1400
        %v1417 = vrsqrt.pop %v1401
        %v1418 = vrsqrt.pop %v1402
        %v1419 = vrsqrt.pop %v1403
        %v1420 = vrsqrt.pop %v1404
        %v1421 = vrsqrt.pop %v1405
        %v1422 = vrsqrt.pop %v1406
        %v1423 = vrsqrt.pop %v1407
        %v1424 = vrsqrt.pop %v1408
        %v1425 = vrsqrt.pop %v1409
        %v1426 = vrsqrt.pop %v1410
        %v1427 = vrsqrt.pop %v1411
        %v1428 = vmul.f32 %v1380, %v1412
        %v1429 = vmul.f32 %v1381, %v1413
        %v1430 = vmul.f32 %v1382, %v1414
        %v1431 = vmul.f32 %v1383, %v1415
        %v1432 = vmul.f32 %v1384, %v1416
        %v1433 = vmul.f32 %v1385, %v1417
        %v1434 = vmul.f32 %v1386, %v1418
        %v1435 = vmul.f32 %v1387, %v1419
        %v1436 = vmul.f32 %v1388, %v1420
        %v1437 = vmul.f32 %v1389, %v1421
        %v1438 = vmul.f32 %v1390, %v1422
        %v1439 = vmul.f32 %v1391, %v1423
        %v1440 = vmul.f32 %v1392, %v1424
        %v1441 = vmul.f32 %v1393, %v1425
        %v1442 = vmul.f32 %v1394, %v1426
        %v1443 = vmul.f32 %v1395, %v1427
        %v1444 = vld [vmem:[%s4] sm:$0x1]
        %v1446 = vlaneseq
        %v1447 = vshrl.u32 %v1446, 7
        %v1448 = vsub.s32 0, %v1447
        %v1449 = vrot.slane %v1444, %v1448
        %v1451 = vmul.f32 %v1428, %v1449
        %v1452 = vmul.f32 %v1429, %v1449
        %v1453 = vmul.f32 %v1430, %v1449
        %v1454 = vmul.f32 %v1431, %v1449
        %v1455 = vmul.f32 %v1432, %v1449
        %v1456 = vmul.f32 %v1433, %v1449
        %v1457 = vmul.f32 %v1434, %v1449
        %v1458 = vmul.f32 %v1435, %v1449
        %v1459 = vmul.f32 %v1436, %v1449
        %v1460 = vmul.f32 %v1437, %v1449
        %v1461 = vmul.f32 %v1438, %v1449
        %v1462 = vmul.f32 %v1439, %v1449
        %v1463 = vmul.f32 %v1440, %v1449
        %v1464 = vmul.f32 %v1441, %v1449
        %v1465 = vmul.f32 %v1442, %v1449
        %v1466 = vmul.f32 %v1443, %v1449
        %v1467 = vld [vmem:[%s5] sm:$0x1]
        %v1469 = vlaneseq
        %v1470 = vshrl.u32 %v1469, 7
        %v1471 = vsub.s32 0, %v1470
        %v1472 = vrot.slane %v1467, %v1471
        %v1474 = vadd.f32 %v1451, %v1472
        %v1475 = vadd.f32 %v1452, %v1472
        %v1476 = vadd.f32 %v1453, %v1472
        %v1477 = vadd.f32 %v1454, %v1472
        %v1478 = vadd.f32 %v1455, %v1472
        %v1479 = vadd.f32 %v1456, %v1472
        %v1480 = vadd.f32 %v1457, %v1472
        %v1481 = vadd.f32 %v1458, %v1472
        %v1482 = vadd.f32 %v1459, %v1472
        %v1483 = vadd.f32 %v1460, %v1472
        %v1484 = vadd.f32 %v1461, %v1472
        %v1485 = vadd.f32 %v1462, %v1472
        %v1486 = vadd.f32 %v1463, %v1472
        %v1487 = vadd.f32 %v1464, %v1472
        %v1488 = vadd.f32 %v1465, %v1472
        %v1489 = vadd.f32 %v1466, %v1472
        %v1490 = vpack.c.bf16 %v1475, %v1474
        %v1491 = vpack.c.bf16 %v1477, %v1476
        %v1492 = vpack.c.bf16 %v1479, %v1478
        %v1493 = vpack.c.bf16 %v1481, %v1480
        %v1494 = vpack.c.bf16 %v1483, %v1482
        %v1495 = vpack.c.bf16 %v1485, %v1484
        %v1496 = vpack.c.bf16 %v1487, %v1486
        %v1497 = vpack.c.bf16 %v1489, %v1488
        %v1498 = vld [vmem:[%s6] sm:$0xf]
        %v1499 = vld [vmem:[%s6 + $0x4] sm:$0xf]
        %v1500 = vld [vmem:[%s6 + $0x8] sm:$0xf]
        %v1501 = vld [vmem:[%s6 + $0xc] sm:$0xf]
        %v1506 = vunpack.c.l.b16 %v1498
        %v1507 = vunpack.c.l.b16 %v1499
        %v1508 = vunpack.c.l.b16 %v1500
        %v1509 = vunpack.c.l.b16 %v1501
        %v1510 = vpack.c.b16 %v1507, %v1506
        %v1511 = vpack.c.b16 %v1509, %v1508
        %v1515 = vsel %vm1186, %v1490, 0
        %v1518 = vsel %vm1186, %v1491, 0
        %v1521 = vsel %vm1186, %v1492, 0
        %v1524 = vsel %vm1186, %v1493, 0
        %v1527 = vsel %vm1186, %v1494, 0
        %v1530 = vsel %vm1186, %v1495, 0
        %v1533 = vsel %vm1186, %v1496, 0
        %v1536 = vsel %vm1186, %v1497, 0
        %1538 = vmatprep.subr.bf16.mxu0 0
        %1539 = vmatpush1.bf16.msra.mxu0 %v1510
        %1540 = vmatprep.subr.bf16.mxu0 0
        %1541 = vmatpush1.bf16.msra.mxu0 %v1511
        %1542 = vmatprep.subr.bf16.mxu0 0
        %1543 = vmatpush1.bf16.msra.mxu0 0
        %1544 = vmatprep.subr.bf16.mxu0 0
        %1545 = vmatpush1.bf16.msra.mxu0 0
        %1546 = vmatprep.subr.bf16.mxu0 0
        %1547 = vmatpush1.bf16.msra.mxu0 0
        %1548 = vmatprep.subr.bf16.mxu0 0
        %1549 = vmatpush1.bf16.msra.mxu0 0
        %1550 = vmatprep.subr.bf16.mxu0 0
        %1551 = vmatpush1.bf16.msra.mxu0 0
        %1552 = vmatprep.subr.bf16.mxu0 0
        %1553 = vmatpush1.bf16.msra.mxu0 0
        %1554 = vmatprep.subr.bf16.mxu0 0
        %1555 = vmatpush1.bf16.msra.mxu0 0
        %1556 = vmatprep.subr.bf16.mxu0 0
        %1557 = vmatpush1.bf16.msra.mxu0 0
        %1558 = vmatprep.subr.bf16.mxu0 0
        %1559 = vmatpush1.bf16.msra.mxu0 0
        %1560 = vmatprep.subr.bf16.mxu0 0
        %1561 = vmatpush1.bf16.msra.mxu0 0
        %1562 = vmatprep.subr.bf16.mxu0 0
        %1563 = vmatpush1.bf16.msra.mxu0 0
        %1564 = vmatprep.subr.bf16.mxu0 0
        %1565 = vmatpush1.bf16.msra.mxu0 0
        %1566 = vmatprep.subr.bf16.mxu0 0
        %1567 = vmatpush1.bf16.msra.mxu0 0
        %1568 = vmatprep.subr.bf16.mxu0 0
        %1569 = vmatpush1.bf16.msra.mxu0 0
        %1570 = vmatprep.mubr.bf16.mxu0 0
        %1571 = vmatmul.mubr.bf16.gmra.mrb[0].mxu0 %v1515
        %v1572 = vpop.f32.mrb[0].mxu0
        %v1573 = vadd.f32 0.0, %v1572
        %v1574 = vpop.f32.mrb[0].mxu0
        %v1575 = vpop.f32.mrb[0].mxu0
        %v1576 = vadd.f32 0.0, %v1575
        %v1577 = vpop.f32.mrb[0].mxu0
        %1578 = vmatprep.mubr.bf16.mxu0 0
        %1579 = vmatmul.mubr.bf16.gmra.mrb[0].mxu0 %v1518
        %v1580 = vpop.f32.mrb[0].mxu0
        %v1581 = vadd.f32 0.0, %v1580
        %v1582 = vpop.f32.mrb[0].mxu0
        %v1583 = vpop.f32.mrb[0].mxu0
        %v1584 = vadd.f32 0.0, %v1583
        %v1585 = vpop.f32.mrb[0].mxu0
        %1586 = vmatprep.mubr.bf16.mxu0 0
        %1587 = vmatmul.mubr.bf16.gmra.mrb[0].mxu0 %v1521
        %v1588 = vpop.f32.mrb[0].mxu0
        %v1589 = vadd.f32 0.0, %v1588
        %v1590 = vpop.f32.mrb[0].mxu0
        %v1591 = vpop.f32.mrb[0].mxu0
        %v1592 = vadd.f32 0.0, %v1591
        %v1593 = vpop.f32.mrb[0].mxu0
        %1594 = vmatprep.mubr.bf16.mxu0 0
        %1595 = vmatmul.mubr.bf16.gmra.mrb[0].mxu0 %v1524
        %v1596 = vpop.f32.mrb[0].mxu0
        %v1597 = vadd.f32 0.0, %v1596
        %v1598 = vpop.f32.mrb[0].mxu0
        %v1599 = vpop.f32.mrb[0].mxu0
        %v1600 = vadd.f32 0.0, %v1599
        %v1601 = vpop.f32.mrb[0].mxu0
        %1602 = vmatprep.mubr.bf16.mxu0 0
        %1603 = vmatmul.mubr.bf16.gmra.mrb[0].mxu0 %v1527
        %v1604 = vpop.f32.mrb[0].mxu0
        %v1605 = vadd.f32 0.0, %v1604
        %v1606 = vpop.f32.mrb[0].mxu0
        %v1607 = vpop.f32.mrb[0].mxu0
        %v1608 = vadd.f32 0.0, %v1607
        %v1609 = vpop.f32.mrb[0].mxu0
        %1610 = vmatprep.mubr.bf16.mxu0 0
        %1611 = vmatmul.mubr.bf16.gmra.mrb[0].mxu0 %v1530
        %v1612 = vpop.f32.mrb[0].mxu0
        %v1613 = vadd.f32 0.0, %v1612
        %v1614 = vpop.f32.mrb[0].mxu0
        %v1615 = vpop.f32.mrb[0].mxu0
        %v1616 = vadd.f32 0.0, %v1615
        %v1617 = vpop.f32.mrb[0].mxu0
        %1618 = vmatprep.mubr.bf16.mxu0 0
        %1619 = vmatmul.mubr.bf16.gmra.mrb[0].mxu0 %v1533
        %v1620 = vpop.f32.mrb[0].mxu0
        %v1621 = vadd.f32 0.0, %v1620
        %v1622 = vpop.f32.mrb[0].mxu0
        %v1623 = vpop.f32.mrb[0].mxu0
        %v1624 = vadd.f32 0.0, %v1623
        %v1625 = vpop.f32.mrb[0].mxu0
        %1626 = vmatprep.mubr.bf16.mxu0 0
        %1627 = vmatmul.mubr.bf16.gmra.mrb[0].mxu0 %v1536
        %v1628 = vpop.f32.mrb[0].mxu0
        %v1629 = vadd.f32 0.0, %v1628
        %v1630 = vpop.f32.mrb[0].mxu0
        %v1631 = vpop.f32.mrb[0].mxu0
        %v1632 = vadd.f32 0.0, %v1631
        %v1633 = vpop.f32.mrb[0].mxu0
        %1634 = vdwg.mxu0
        %s1635 = scalar_lea.vmem %s6, 16
        %v1636 = vld [vmem:[%s1635] sm:$0xf]
        %v1637 = vld [vmem:[%s1635 + $0x4] sm:$0xf]
        %v1638 = vld [vmem:[%s1635 + $0x8] sm:$0xf]
        %v1639 = vld [vmem:[%s1635 + $0xc] sm:$0xf]
        %v1644 = vunpack.c.l.b16 %v1636
        %v1645 = vunpack.c.l.b16 %v1637
        %v1646 = vunpack.c.l.b16 %v1638
        %v1647 = vunpack.c.l.b16 %v1639
        %v1648 = vpack.c.b16 %v1645, %v1644
        %v1649 = vpack.c.b16 %v1647, %v1646
        %1652 = vmatprep.subr.bf16.mxu0 0
        %1653 = vmatpush1.bf16.msra.mxu0 %v1648
        %1654 = vmatprep.subr.bf16.mxu0 0
        %1655 = vmatpush1.bf16.msra.mxu0 %v1649
        %1656 = vmatprep.subr.bf16.mxu0 0
        %1657 = vmatpush1.bf16.msra.mxu0 0
        %1658 = vmatprep.subr.bf16.mxu0 0
        %1659 = vmatpush1.bf16.msra.mxu0 0
        %1660 = vmatprep.subr.bf16.mxu0 0
        %1661 = vmatpush1.bf16.msra.mxu0 0
        %1662 = vmatprep.subr.bf16.mxu0 0
        %1663 = vmatpush1.bf16.msra.mxu0 0
        %1664 = vmatprep.subr.bf16.mxu0 0
        %1665 = vmatpush1.bf16.msra.mxu0 0
        %1666 = vmatprep.subr.bf16.mxu0 0
        %1667 = vmatpush1.bf16.msra.mxu0 0
        %1668 = vmatprep.subr.bf16.mxu0 0
        %1669 = vmatpush1.bf16.msra.mxu0 0
        %1670 = vmatprep.subr.bf16.mxu0 0
        %1671 = vmatpush1.bf16.msra.mxu0 0
        %1672 = vmatprep.subr.bf16.mxu0 0
        %1673 = vmatpush1.bf16.msra.mxu0 0
        %1674 = vmatprep.subr.bf16.mxu0 0
        %1675 = vmatpush1.bf16.msra.mxu0 0
        %1676 = vmatprep.subr.bf16.mxu0 0
        %1677 = vmatpush1.bf16.msra.mxu0 0
        %1678 = vmatprep.subr.bf16.mxu0 0
        %1679 = vmatpush1.bf16.msra.mxu0 0
        %1680 = vmatprep.subr.bf16.mxu0 0
        %1681 = vmatpush1.bf16.msra.mxu0 0
        %1682 = vmatprep.subr.bf16.mxu0 0
        %1683 = vmatpush1.bf16.msra.mxu0 0
        %1684 = vmatprep.mubr.bf16.mxu0 0
        %1685 = vmatmul.mubr.bf16.gmra.mrb[0].mxu0 %v1515
        %v1686 = vpop.f32.mrb[0].mxu0
        %v1687 = vadd.f32 0.0, %v1686
        %v1688 = vpop.f32.mrb[0].mxu0
        %v1689 = vpop.f32.mrb[0].mxu0
        %v1690 = vadd.f32 0.0, %v1689
        %v1691 = vpop.f32.mrb[0].mxu0
        %1692 = vmatprep.mubr.bf16.mxu0 0
        %1693 = vmatmul.mubr.bf16.gmra.mrb[0].mxu0 %v1518
        %v1694 = vpop.f32.mrb[0].mxu0
        %v1695 = vadd.f32 0.0, %v1694
        %v1696 = vpop.f32.mrb[0].mxu0
        %v1697 = vpop.f32.mrb[0].mxu0
        %v1698 = vadd.f32 0.0, %v1697
        %v1699 = vpop.f32.mrb[0].mxu0
        %1700 = vmatprep.mubr.bf16.mxu0 0
        %1701 = vmatmul.mubr.bf16.gmra.mrb[0].mxu0 %v1521
        %v1702 = vpop.f32.mrb[0].mxu0
        %v1703 = vadd.f32 0.0, %v1702
        %v1704 = vpop.f32.mrb[0].mxu0
        %v1705 = vpop.f32.mrb[0].mxu0
        %v1706 = vadd.f32 0.0, %v1705
        %v1707 = vpop.f32.mrb[0].mxu0
        %1708 = vmatprep.mubr.bf16.mxu0 0
        %1709 = vmatmul.mubr.bf16.gmra.mrb[0].mxu0 %v1524
        %v1710 = vpop.f32.mrb[0].mxu0
        %v1711 = vadd.f32 0.0, %v1710
        %v1712 = vpop.f32.mrb[0].mxu0
        %v1713 = vpop.f32.mrb[0].mxu0
        %v1714 = vadd.f32 0.0, %v1713
        %v1715 = vpop.f32.mrb[0].mxu0
        %1716 = vmatprep.mubr.bf16.mxu0 0
        %1717 = vmatmul.mubr.bf16.gmra.mrb[0].mxu0 %v1527
        %v1718 = vpop.f32.mrb[0].mxu0
        %v1719 = vadd.f32 0.0, %v1718
        %v1720 = vpop.f32.mrb[0].mxu0
        %v1721 = vpop.f32.mrb[0].mxu0
        %v1722 = vadd.f32 0.0, %v1721
        %v1723 = vpop.f32.mrb[0].mxu0
        %1724 = vmatprep.mubr.bf16.mxu0 0
        %1725 = vmatmul.mubr.bf16.gmra.mrb[0].mxu0 %v1530
        %v1726 = vpop.f32.mrb[0].mxu0
        %v1727 = vadd.f32 0.0, %v1726
        %v1728 = vpop.f32.mrb[0].mxu0
        %v1729 = vpop.f32.mrb[0].mxu0
        %v1730 = vadd.f32 0.0, %v1729
        %v1731 = vpop.f32.mrb[0].mxu0
        %1732 = vmatprep.mubr.bf16.mxu0 0
        %1733 = vmatmul.mubr.bf16.gmra.mrb[0].mxu0 %v1533
        %v1734 = vpop.f32.mrb[0].mxu0
        %v1735 = vadd.f32 0.0, %v1734
        %v1736 = vpop.f32.mrb[0].mxu0
        %v1737 = vpop.f32.mrb[0].mxu0
        %v1738 = vadd.f32 0.0, %v1737
        %v1739 = vpop.f32.mrb[0].mxu0
        %1740 = vmatprep.mubr.bf16.mxu0 0
        %1741 = vmatmul.mubr.bf16.gmra.mrb[0].mxu0 %v1536
        %v1742 = vpop.f32.mrb[0].mxu0
        %v1743 = vadd.f32 0.0, %v1742
        %v1744 = vpop.f32.mrb[0].mxu0
        %v1745 = vpop.f32.mrb[0].mxu0
        %v1746 = vadd.f32 0.0, %v1745
        %v1747 = vpop.f32.mrb[0].mxu0
        %1748 = vdwg.mxu0
        %s1749 = scalar_lea.vmem %s6, 32
        %v1750 = vld [vmem:[%s1749] sm:$0xf]
        %v1751 = vld [vmem:[%s1749 + $0x4] sm:$0xf]
        %v1752 = vld [vmem:[%s1749 + $0x8] sm:$0xf]
        %v1753 = vld [vmem:[%s1749 + $0xc] sm:$0xf]
        %v1758 = vunpack.c.l.b16 %v1750
        %v1759 = vunpack.c.l.b16 %v1751
        %v1760 = vunpack.c.l.b16 %v1752
        %v1761 = vunpack.c.l.b16 %v1753
        %v1762 = vpack.c.b16 %v1759, %v1758
        %v1763 = vpack.c.b16 %v1761, %v1760
        %1766 = vmatprep.subr.bf16.mxu0 0
        %1767 = vmatpush1.bf16.msra.mxu0 %v1762
        %1768 = vmatprep.subr.bf16.mxu0 0
        %1769 = vmatpush1.bf16.msra.mxu0 %v1763
        %1770 = vmatprep.subr.bf16.mxu0 0
        %1771 = vmatpush1.bf16.msra.mxu0 0
        %1772 = vmatprep.subr.bf16.mxu0 0
        %1773 = vmatpush1.bf16.msra.mxu0 0
        %1774 = vmatprep.subr.bf16.mxu0 0
        %1775 = vmatpush1.bf16.msra.mxu0 0
        %1776 = vmatprep.subr.bf16.mxu0 0
        %1777 = vmatpush1.bf16.msra.mxu0 0
        %1778 = vmatprep.subr.bf16.mxu0 0
        %1779 = vmatpush1.bf16.msra.mxu0 0
        %1780 = vmatprep.subr.bf16.mxu0 0
        %1781 = vmatpush1.bf16.msra.mxu0 0
        %1782 = vmatprep.subr.bf16.mxu0 0
        %1783 = vmatpush1.bf16.msra.mxu0 0
        %1784 = vmatprep.subr.bf16.mxu0 0
        %1785 = vmatpush1.bf16.msra.mxu0 0
        %1786 = vmatprep.subr.bf16.mxu0 0
        %1787 = vmatpush1.bf16.msra.mxu0 0
        %1788 = vmatprep.subr.bf16.mxu0 0
        %1789 = vmatpush1.bf16.msra.mxu0 0
        %1790 = vmatprep.subr.bf16.mxu0 0
        %1791 = vmatpush1.bf16.msra.mxu0 0
        %1792 = vmatprep.subr.bf16.mxu0 0
        %1793 = vmatpush1.bf16.msra.mxu0 0
        %1794 = vmatprep.subr.bf16.mxu0 0
        %1795 = vmatpush1.bf16.msra.mxu0 0
        %1796 = vmatprep.subr.bf16.mxu0 0
        %1797 = vmatpush1.bf16.msra.mxu0 0
        %1798 = vmatprep.mubr.bf16.mxu0 0
        %1799 = vmatmul.mubr.bf16.gmra.mrb[0].mxu0 %v1515
        %v1800 = vpop.f32.mrb[0].mxu0
        %v1801 = vadd.f32 0.0, %v1800
        %v1802 = vpop.f32.mrb[0].mxu0
        %v1803 = vpop.f32.mrb[0].mxu0
        %v1804 = vadd.f32 0.0, %v1803
        %v1805 = vpop.f32.mrb[0].mxu0
        %1806 = vmatprep.mubr.bf16.mxu0 0
        %1807 = vmatmul.mubr.bf16.gmra.mrb[0].mxu0 %v1518
        %v1808 = vpop.f32.mrb[0].mxu0
        %v1809 = vadd.f32 0.0, %v1808
        %v1810 = vpop.f32.mrb[0].mxu0
        %v1811 = vpop.f32.mrb[0].mxu0
        %v1812 = vadd.f32 0.0, %v1811
        %v1813 = vpop.f32.mrb[0].mxu0
        %1814 = vmatprep.mubr.bf16.mxu0 0
        %1815 = vmatmul.mubr.bf16.gmra.mrb[0].mxu0 %v1521
        %v1816 = vpop.f32.mrb[0].mxu0
        %v1817 = vadd.f32 0.0, %v1816
        %v1818 = vpop.f32.mrb[0].mxu0
        %v1819 = vpop.f32.mrb[0].mxu0
        %v1820 = vadd.f32 0.0, %v1819
        %v1821 = vpop.f32.mrb[0].mxu0
        %1822 = vmatprep.mubr.bf16.mxu0 0
        %1823 = vmatmul.mubr.bf16.gmra.mrb[0].mxu0 %v1524
        %v1824 = vpop.f32.mrb[0].mxu0
        %v1825 = vadd.f32 0.0, %v1824
        %v1826 = vpop.f32.mrb[0].mxu0
        %v1827 = vpop.f32.mrb[0].mxu0
        %v1828 = vadd.f32 0.0, %v1827
        %v1829 = vpop.f32.mrb[0].mxu0
        %1830 = vmatprep.mubr.bf16.mxu0 0
        %1831 = vmatmul.mubr.bf16.gmra.mrb[0].mxu0 %v1527
        %v1832 = vpop.f32.mrb[0].mxu0
        %v1833 = vadd.f32 0.0, %v1832
        %v1834 = vpop.f32.mrb[0].mxu0
        %v1835 = vpop.f32.mrb[0].mxu0
        %v1836 = vadd.f32 0.0, %v1835
        %v1837 = vpop.f32.mrb[0].mxu0
        %1838 = vmatprep.mubr.bf16.mxu0 0
        %1839 = vmatmul.mubr.bf16.gmra.mrb[0].mxu0 %v1530
        %v1840 = vpop.f32.mrb[0].mxu0
        %v1841 = vadd.f32 0.0, %v1840
        %v1842 = vpop.f32.mrb[0].mxu0
        %v1843 = vpop.f32.mrb[0].mxu0
        %v1844 = vadd.f32 0.0, %v1843
        %v1845 = vpop.f32.mrb[0].mxu0
        %1846 = vmatprep.mubr.bf16.mxu0 0
        %1847 = vmatmul.mubr.bf16.gmra.mrb[0].mxu0 %v1533
        %v1848 = vpop.f32.mrb[0].mxu0
        %v1849 = vadd.f32 0.0, %v1848
        %v1850 = vpop.f32.mrb[0].mxu0
        %v1851 = vpop.f32.mrb[0].mxu0
        %v1852 = vadd.f32 0.0, %v1851
        %v1853 = vpop.f32.mrb[0].mxu0
        %1854 = vmatprep.mubr.bf16.mxu0 0
        %1855 = vmatmul.mubr.bf16.gmra.mrb[0].mxu0 %v1536
        %v1856 = vpop.f32.mrb[0].mxu0
        %v1857 = vadd.f32 0.0, %v1856
        %v1858 = vpop.f32.mrb[0].mxu0
        %v1859 = vpop.f32.mrb[0].mxu0
        %v1860 = vadd.f32 0.0, %v1859
        %v1861 = vpop.f32.mrb[0].mxu0
        %1862 = vdwg.mxu0
        %v1863 = vrot.slane %v1573, 7
        %v1864 = vrot.slane %v1576, 7
        %v1865 = vrot.slane %v1581, 7
        %v1866 = vrot.slane %v1584, 7
        %v1867 = vrot.slane %v1589, 7
        %v1868 = vrot.slane %v1592, 7
        %v1869 = vrot.slane %v1597, 7
        %v1870 = vrot.slane %v1600, 7
        %v1871 = vrot.slane %v1605, 7
        %v1872 = vrot.slane %v1608, 7
        %v1873 = vrot.slane %v1613, 7
        %v1874 = vrot.slane %v1616, 7
        %v1875 = vrot.slane %v1621, 7
        %v1876 = vrot.slane %v1624, 7
        %v1877 = vrot.slane %v1629, 7
        %v1878 = vrot.slane %v1632, 7
        %v1879 = vsel %vm1033, %v1877, %v1878
        %v1880 = vsel %vm1033, %v1876, %v1877
        %v1881 = vsel %vm1033, %v1875, %v1876
        %v1882 = vsel %vm1033, %v1874, %v1875
        %v1883 = vsel %vm1033, %v1873, %v1874
        %v1884 = vsel %vm1033, %v1872, %v1873
        %v1885 = vsel %vm1033, %v1871, %v1872
        %v1886 = vsel %vm1033, %v1870, %v1871
        %v1887 = vsel %vm1033, %v1869, %v1870
        %v1888 = vsel %vm1033, %v1868, %v1869
        %v1889 = vsel %vm1033, %v1867, %v1868
        %v1890 = vsel %vm1033, %v1866, %v1867
        %v1891 = vsel %vm1033, %v1865, %v1866
        %v1892 = vsel %vm1033, %v1864, %v1865
        %v1893 = vsel %vm1033, %v1863, %v1864
        %v1894 = vsel %vm1033, %v1878, %v1863
        %v1895 = vmul.f32 %v1894, %v566
        %v1896 = vmul.f32 %v1893, %v567
        %v1897 = vmul.f32 %v1892, %v568
        %v1898 = vmul.f32 %v1891, %v569
        %v1899 = vmul.f32 %v1890, %v570
        %v1900 = vmul.f32 %v1889, %v571
        %v1901 = vmul.f32 %v1888, %v572
        %v1902 = vmul.f32 %v1887, %v573
        %v1903 = vmul.f32 %v1886, %v574
        %v1904 = vmul.f32 %v1885, %v575
        %v1905 = vmul.f32 %v1884, %v576
        %v1906 = vmul.f32 %v1883, %v577
        %v1907 = vmul.f32 %v1882, %v578
        %v1908 = vmul.f32 %v1881, %v579
        %v1909 = vmul.f32 %v1880, %v580
        %v1910 = vmul.f32 %v1879, %v581
        %v1911 = vadd.f32 %v1895, %v1687
        %v1912 = vadd.f32 %v1896, %v1690
        %v1913 = vadd.f32 %v1897, %v1695
        %v1914 = vadd.f32 %v1898, %v1698
        %v1915 = vadd.f32 %v1899, %v1703
        %v1916 = vadd.f32 %v1900, %v1706
        %v1917 = vadd.f32 %v1901, %v1711
        %v1918 = vadd.f32 %v1902, %v1714
        %v1919 = vadd.f32 %v1903, %v1719
        %v1920 = vadd.f32 %v1904, %v1722
        %v1921 = vadd.f32 %v1905, %v1727
        %v1922 = vadd.f32 %v1906, %v1730
        %v1923 = vadd.f32 %v1907, %v1735
        %v1924 = vadd.f32 %v1908, %v1738
        %v1925 = vadd.f32 %v1909, %v1743
        %v1926 = vadd.f32 %v1910, %v1746
        %v1927 = vrot.slane %v1801, 1
        %v1928 = vrot.slane %v1804, 1
        %v1929 = vrot.slane %v1809, 1
        %v1930 = vrot.slane %v1812, 1
        %v1931 = vrot.slane %v1817, 1
        %v1932 = vrot.slane %v1820, 1
        %v1933 = vrot.slane %v1825, 1
        %v1934 = vrot.slane %v1828, 1
        %v1935 = vrot.slane %v1833, 1
        %v1936 = vrot.slane %v1836, 1
        %v1937 = vrot.slane %v1841, 1
        %v1938 = vrot.slane %v1844, 1
        %v1939 = vrot.slane %v1849, 1
        %v1940 = vrot.slane %v1852, 1
        %v1941 = vrot.slane %v1857, 1
        %v1942 = vrot.slane %v1860, 1
        %v1943 = vsel %vm1098, %v1941, %v1942
        %v1944 = vsel %vm1098, %v1940, %v1941
        %v1945 = vsel %vm1098, %v1939, %v1940
        %v1946 = vsel %vm1098, %v1938, %v1939
        %v1947 = vsel %vm1098, %v1937, %v1938
        %v1948 = vsel %vm1098, %v1936, %v1937
        %v1949 = vsel %vm1098, %v1935, %v1936
        %v1950 = vsel %vm1098, %v1934, %v1935
        %v1951 = vsel %vm1098, %v1933, %v1934
        %v1952 = vsel %vm1098, %v1932, %v1933
        %v1953 = vsel %vm1098, %v1931, %v1932
        %v1954 = vsel %vm1098, %v1930, %v1931
        %v1955 = vsel %vm1098, %v1929, %v1930
        %v1956 = vsel %vm1098, %v1928, %v1929
        %v1957 = vsel %vm1098, %v1927, %v1928
        %v1958 = vsel %vm1098, %v1942, %v1927
        %v1959 = vmul.f32 %v1957, %v614
        %v1960 = vmul.f32 %v1956, %v615
        %v1961 = vmul.f32 %v1955, %v616
        %v1962 = vmul.f32 %v1954, %v617
        %v1963 = vmul.f32 %v1953, %v618
        %v1964 = vmul.f32 %v1952, %v619
        %v1965 = vmul.f32 %v1951, %v620
        %v1966 = vmul.f32 %v1950, %v621
        %v1967 = vmul.f32 %v1949, %v622
        %v1968 = vmul.f32 %v1948, %v623
        %v1969 = vmul.f32 %v1947, %v624
        %v1970 = vmul.f32 %v1946, %v625
        %v1971 = vmul.f32 %v1945, %v626
        %v1972 = vmul.f32 %v1944, %v627
        %v1973 = vmul.f32 %v1943, %v628
        %v1974 = vmul.f32 %v1958, %v629
        %v1975 = vadd.f32 %v1911, %v1959
        %v1976 = vadd.f32 %v1912, %v1960
        %v1977 = vadd.f32 %v1913, %v1961
        %v1978 = vadd.f32 %v1914, %v1962
        %v1979 = vadd.f32 %v1915, %v1963
        %v1980 = vadd.f32 %v1916, %v1964
        %v1981 = vadd.f32 %v1917, %v1965
        %v1982 = vadd.f32 %v1918, %v1966
        %v1983 = vadd.f32 %v1919, %v1967
        %v1984 = vadd.f32 %v1920, %v1968
        %v1985 = vadd.f32 %v1921, %v1969
        %v1986 = vadd.f32 %v1922, %v1970
        %v1987 = vadd.f32 %v1923, %v1971
        %v1988 = vadd.f32 %v1924, %v1972
        %v1989 = vadd.f32 %v1925, %v1973
        %v1990 = vadd.f32 %v1926, %v1974
        %v1991 = vld [vmem:[%s7] sm:$0x1]
        %v1993 = vlaneseq
        %v1994 = vshrl.u32 %v1993, 7
        %v1995 = vsub.s32 0, %v1994
        %v1996 = vrot.slane %v1991, %v1995
        %v1998 = vadd.f32 %v1975, %v1996
        %v1999 = vadd.f32 %v1976, %v1996
        %v2000 = vadd.f32 %v1977, %v1996
        %v2001 = vadd.f32 %v1978, %v1996
        %v2002 = vadd.f32 %v1979, %v1996
        %v2003 = vadd.f32 %v1980, %v1996
        %v2004 = vadd.f32 %v1981, %v1996
        %v2005 = vadd.f32 %v1982, %v1996
        %v2006 = vadd.f32 %v1983, %v1996
        %v2007 = vadd.f32 %v1984, %v1996
        %v2008 = vadd.f32 %v1985, %v1996
        %v2009 = vadd.f32 %v1986, %v1996
        %v2010 = vadd.f32 %v1987, %v1996
        %v2011 = vadd.f32 %v1988, %v1996
        %v2012 = vadd.f32 %v1989, %v1996
        %v2013 = vadd.f32 %v1990, %v1996
        %v2014 = vmax.f32 %v1998, 0.0
        %v2015 = vmax.f32 %v1999, 0.0
        %v2016 = vmax.f32 %v2000, 0.0
        %v2017 = vmax.f32 %v2001, 0.0
        %v2018 = vmax.f32 %v2002, 0.0
        %v2019 = vmax.f32 %v2003, 0.0
        %v2020 = vmax.f32 %v2004, 0.0
        %v2021 = vmax.f32 %v2005, 0.0
        %v2022 = vmax.f32 %v2006, 0.0
        %v2023 = vmax.f32 %v2007, 0.0
        %v2024 = vmax.f32 %v2008, 0.0
        %v2025 = vmax.f32 %v2009, 0.0
        %v2026 = vmax.f32 %v2010, 0.0
        %v2027 = vmax.f32 %v2011, 0.0
        %v2028 = vmax.f32 %v2012, 0.0
        %v2029 = vmax.f32 %v2013, 0.0
        %v2030 = vsel %vm1186, %v2014, 0.0
        %2031 = vadd.xlane.f32.xlu0 %v2030
        %v2032 = vpop.xlane.xlu0 %2031
        %v2033 = vsel %vm1186, %v2015, 0.0
        %2034 = vadd.xlane.f32.xlu0 %v2033
        %v2035 = vpop.xlane.xlu0 %2034
        %v2036 = vsel %vm1186, %v2016, 0.0
        %2037 = vadd.xlane.f32.xlu0 %v2036
        %v2038 = vpop.xlane.xlu0 %2037
        %v2039 = vsel %vm1186, %v2017, 0.0
        %2040 = vadd.xlane.f32.xlu0 %v2039
        %v2041 = vpop.xlane.xlu0 %2040
        %v2042 = vsel %vm1186, %v2018, 0.0
        %2043 = vadd.xlane.f32.xlu0 %v2042
        %v2044 = vpop.xlane.xlu0 %2043
        %v2045 = vsel %vm1186, %v2019, 0.0
        %2046 = vadd.xlane.f32.xlu0 %v2045
        %v2047 = vpop.xlane.xlu0 %2046
        %v2048 = vsel %vm1186, %v2020, 0.0
        %2049 = vadd.xlane.f32.xlu0 %v2048
        %v2050 = vpop.xlane.xlu0 %2049
        %v2051 = vsel %vm1186, %v2021, 0.0
        %2052 = vadd.xlane.f32.xlu0 %v2051
        %v2053 = vpop.xlane.xlu0 %2052
        %v2054 = vsel %vm1186, %v2022, 0.0
        %2055 = vadd.xlane.f32.xlu0 %v2054
        %v2056 = vpop.xlane.xlu0 %2055
        %v2057 = vsel %vm1186, %v2023, 0.0
        %2058 = vadd.xlane.f32.xlu0 %v2057
        %v2059 = vpop.xlane.xlu0 %2058
        %v2060 = vsel %vm1186, %v2024, 0.0
        %2061 = vadd.xlane.f32.xlu0 %v2060
        %v2062 = vpop.xlane.xlu0 %2061
        %v2063 = vsel %vm1186, %v2025, 0.0
        %2064 = vadd.xlane.f32.xlu0 %v2063
        %v2065 = vpop.xlane.xlu0 %2064
        %v2066 = vsel %vm1186, %v2026, 0.0
        %2067 = vadd.xlane.f32.xlu0 %v2066
        %v2068 = vpop.xlane.xlu0 %2067
        %v2069 = vsel %vm1186, %v2027, 0.0
        %2070 = vadd.xlane.f32.xlu0 %v2069
        %v2071 = vpop.xlane.xlu0 %2070
        %v2072 = vsel %vm1186, %v2028, 0.0
        %2073 = vadd.xlane.f32.xlu0 %v2072
        %v2074 = vpop.xlane.xlu0 %2073
        %v2075 = vsel %vm1186, %v2029, 0.0
        %2076 = vadd.xlane.f32.xlu0 %v2075
        %v2077 = vpop.xlane.xlu0 %2076
        %v2078 = vmul.f32 %v2032, %v1235
        %v2079 = vmul.f32 %v2035, %v1235
        %v2080 = vmul.f32 %v2038, %v1235
        %v2081 = vmul.f32 %v2041, %v1235
        %v2082 = vmul.f32 %v2044, %v1235
        %v2083 = vmul.f32 %v2047, %v1235
        %v2084 = vmul.f32 %v2050, %v1235
        %v2085 = vmul.f32 %v2053, %v1235
        %v2086 = vmul.f32 %v2056, %v1235
        %v2087 = vmul.f32 %v2059, %v1235
        %v2088 = vmul.f32 %v2062, %v1235
        %v2089 = vmul.f32 %v2065, %v1235
        %v2090 = vmul.f32 %v2068, %v1235
        %v2091 = vmul.f32 %v2071, %v1235
        %v2092 = vmul.f32 %v2074, %v1235
        %v2093 = vmul.f32 %v2077, %v1235
        %v2094 = vmul.f32 %v2014, %v2014
        %v2095 = vmul.f32 %v2015, %v2015
        %v2096 = vmul.f32 %v2016, %v2016
        %v2097 = vmul.f32 %v2017, %v2017
        %v2098 = vmul.f32 %v2018, %v2018
        %v2099 = vmul.f32 %v2019, %v2019
        %v2100 = vmul.f32 %v2020, %v2020
        %v2101 = vmul.f32 %v2021, %v2021
        %v2102 = vmul.f32 %v2022, %v2022
        %v2103 = vmul.f32 %v2023, %v2023
        %v2104 = vmul.f32 %v2024, %v2024
        %v2105 = vmul.f32 %v2025, %v2025
        %v2106 = vmul.f32 %v2026, %v2026
        %v2107 = vmul.f32 %v2027, %v2027
        %v2108 = vmul.f32 %v2028, %v2028
        %v2109 = vmul.f32 %v2029, %v2029
        %v2110 = vsel %vm1186, %v2094, 0.0
        %2111 = vadd.xlane.f32.xlu0 %v2110
        %v2112 = vpop.xlane.xlu0 %2111
        %v2113 = vsel %vm1186, %v2095, 0.0
        %2114 = vadd.xlane.f32.xlu0 %v2113
        %v2115 = vpop.xlane.xlu0 %2114
        %v2116 = vsel %vm1186, %v2096, 0.0
        %2117 = vadd.xlane.f32.xlu0 %v2116
        %v2118 = vpop.xlane.xlu0 %2117
        %v2119 = vsel %vm1186, %v2097, 0.0
        %2120 = vadd.xlane.f32.xlu0 %v2119
        %v2121 = vpop.xlane.xlu0 %2120
        %v2122 = vsel %vm1186, %v2098, 0.0
        %2123 = vadd.xlane.f32.xlu0 %v2122
        %v2124 = vpop.xlane.xlu0 %2123
        %v2125 = vsel %vm1186, %v2099, 0.0
        %2126 = vadd.xlane.f32.xlu0 %v2125
        %v2127 = vpop.xlane.xlu0 %2126
        %v2128 = vsel %vm1186, %v2100, 0.0
        %2129 = vadd.xlane.f32.xlu0 %v2128
        %v2130 = vpop.xlane.xlu0 %2129
        %v2131 = vsel %vm1186, %v2101, 0.0
        %2132 = vadd.xlane.f32.xlu0 %v2131
        %v2133 = vpop.xlane.xlu0 %2132
        %v2134 = vsel %vm1186, %v2102, 0.0
        %2135 = vadd.xlane.f32.xlu0 %v2134
        %v2136 = vpop.xlane.xlu0 %2135
        %v2137 = vsel %vm1186, %v2103, 0.0
        %2138 = vadd.xlane.f32.xlu0 %v2137
        %v2139 = vpop.xlane.xlu0 %2138
        %v2140 = vsel %vm1186, %v2104, 0.0
        %2141 = vadd.xlane.f32.xlu0 %v2140
        %v2142 = vpop.xlane.xlu0 %2141
        %v2143 = vsel %vm1186, %v2105, 0.0
        %2144 = vadd.xlane.f32.xlu0 %v2143
        %v2145 = vpop.xlane.xlu0 %2144
        %v2146 = vsel %vm1186, %v2106, 0.0
        %2147 = vadd.xlane.f32.xlu0 %v2146
        %v2148 = vpop.xlane.xlu0 %2147
        %v2149 = vsel %vm1186, %v2107, 0.0
        %2150 = vadd.xlane.f32.xlu0 %v2149
        %v2151 = vpop.xlane.xlu0 %2150
        %v2152 = vsel %vm1186, %v2108, 0.0
        %2153 = vadd.xlane.f32.xlu0 %v2152
        %v2154 = vpop.xlane.xlu0 %2153
        %v2155 = vsel %vm1186, %v2109, 0.0
        %2156 = vadd.xlane.f32.xlu0 %v2155
        %v2157 = vpop.xlane.xlu0 %2156
        %v2158 = vmul.f32 %v2112, %v1235
        %v2159 = vmul.f32 %v2115, %v1235
        %v2160 = vmul.f32 %v2118, %v1235
        %v2161 = vmul.f32 %v2121, %v1235
        %v2162 = vmul.f32 %v2124, %v1235
        %v2163 = vmul.f32 %v2127, %v1235
        %v2164 = vmul.f32 %v2130, %v1235
        %v2165 = vmul.f32 %v2133, %v1235
        %v2166 = vmul.f32 %v2136, %v1235
        %v2167 = vmul.f32 %v2139, %v1235
        %v2168 = vmul.f32 %v2142, %v1235
        %v2169 = vmul.f32 %v2145, %v1235
        %v2170 = vmul.f32 %v2148, %v1235
        %v2171 = vmul.f32 %v2151, %v1235
        %v2172 = vmul.f32 %v2154, %v1235
        %v2173 = vmul.f32 %v2157, %v1235
        %v2174 = vmul.f32 %v2078, %v2078
        %v2175 = vmul.f32 %v2079, %v2079
        %v2176 = vmul.f32 %v2080, %v2080
        %v2177 = vmul.f32 %v2081, %v2081
        %v2178 = vmul.f32 %v2082, %v2082
        %v2179 = vmul.f32 %v2083, %v2083
        %v2180 = vmul.f32 %v2084, %v2084
        %v2181 = vmul.f32 %v2085, %v2085
        %v2182 = vmul.f32 %v2086, %v2086
        %v2183 = vmul.f32 %v2087, %v2087
        %v2184 = vmul.f32 %v2088, %v2088
        %v2185 = vmul.f32 %v2089, %v2089
        %v2186 = vmul.f32 %v2090, %v2090
        %v2187 = vmul.f32 %v2091, %v2091
        %v2188 = vmul.f32 %v2092, %v2092
        %v2189 = vmul.f32 %v2093, %v2093
        %v2190 = vsub.f32 %v2158, %v2174
        %v2191 = vsub.f32 %v2159, %v2175
        %v2192 = vsub.f32 %v2160, %v2176
        %v2193 = vsub.f32 %v2161, %v2177
        %v2194 = vsub.f32 %v2162, %v2178
        %v2195 = vsub.f32 %v2163, %v2179
        %v2196 = vsub.f32 %v2164, %v2180
        %v2197 = vsub.f32 %v2165, %v2181
        %v2198 = vsub.f32 %v2166, %v2182
        %v2199 = vsub.f32 %v2167, %v2183
        %v2200 = vsub.f32 %v2168, %v2184
        %v2201 = vsub.f32 %v2169, %v2185
        %v2202 = vsub.f32 %v2170, %v2186
        %v2203 = vsub.f32 %v2171, %v2187
        %v2204 = vsub.f32 %v2172, %v2188
        %v2205 = vsub.f32 %v2173, %v2189
        %v2206 = vmax.f32 %v2190, 0.0
        %v2207 = vmax.f32 %v2191, 0.0
        %v2208 = vmax.f32 %v2192, 0.0
        %v2209 = vmax.f32 %v2193, 0.0
        %v2210 = vmax.f32 %v2194, 0.0
        %v2211 = vmax.f32 %v2195, 0.0
        %v2212 = vmax.f32 %v2196, 0.0
        %v2213 = vmax.f32 %v2197, 0.0
        %v2214 = vmax.f32 %v2198, 0.0
        %v2215 = vmax.f32 %v2199, 0.0
        %v2216 = vmax.f32 %v2200, 0.0
        %v2217 = vmax.f32 %v2201, 0.0
        %v2218 = vmax.f32 %v2202, 0.0
        %v2219 = vmax.f32 %v2203, 0.0
        %v2220 = vmax.f32 %v2204, 0.0
        %v2221 = vmax.f32 %v2205, 0.0
        %v2222 = vsub.f32 %v2014, %v2078
        %v2223 = vsub.f32 %v2015, %v2079
        %v2224 = vsub.f32 %v2016, %v2080
        %v2225 = vsub.f32 %v2017, %v2081
        %v2226 = vsub.f32 %v2018, %v2082
        %v2227 = vsub.f32 %v2019, %v2083
        %v2228 = vsub.f32 %v2020, %v2084
        %v2229 = vsub.f32 %v2021, %v2085
        %v2230 = vsub.f32 %v2022, %v2086
        %v2231 = vsub.f32 %v2023, %v2087
        %v2232 = vsub.f32 %v2024, %v2088
        %v2233 = vsub.f32 %v2025, %v2089
        %v2234 = vsub.f32 %v2026, %v2090
        %v2235 = vsub.f32 %v2027, %v2091
        %v2236 = vsub.f32 %v2028, %v2092
        %v2237 = vsub.f32 %v2029, %v2093
        %v2238 = vadd.f32 %v2206, 1e-05
        %v2239 = vadd.f32 %v2207, 1e-05
        %v2240 = vadd.f32 %v2208, 1e-05
        %v2241 = vadd.f32 %v2209, 1e-05
        %v2242 = vadd.f32 %v2210, 1e-05
        %v2243 = vadd.f32 %v2211, 1e-05
        %v2244 = vadd.f32 %v2212, 1e-05
        %v2245 = vadd.f32 %v2213, 1e-05
        %v2246 = vadd.f32 %v2214, 1e-05
        %v2247 = vadd.f32 %v2215, 1e-05
        %v2248 = vadd.f32 %v2216, 1e-05
        %v2249 = vadd.f32 %v2217, 1e-05
        %v2250 = vadd.f32 %v2218, 1e-05
        %v2251 = vadd.f32 %v2219, 1e-05
        %v2252 = vadd.f32 %v2220, 1e-05
        %v2253 = vadd.f32 %v2221, 1e-05
        %v2254 = vrsqrt.pop %v2238
        %v2255 = vrsqrt.pop %v2239
        %v2256 = vrsqrt.pop %v2240
        %v2257 = vrsqrt.pop %v2241
        %v2258 = vrsqrt.pop %v2242
        %v2259 = vrsqrt.pop %v2243
        %v2260 = vrsqrt.pop %v2244
        %v2261 = vrsqrt.pop %v2245
        %v2262 = vrsqrt.pop %v2246
        %v2263 = vrsqrt.pop %v2247
        %v2264 = vrsqrt.pop %v2248
        %v2265 = vrsqrt.pop %v2249
        %v2266 = vrsqrt.pop %v2250
        %v2267 = vrsqrt.pop %v2251
        %v2268 = vrsqrt.pop %v2252
        %v2269 = vrsqrt.pop %v2253
        %v2270 = vmul.f32 %v2222, %v2254
        %v2271 = vmul.f32 %v2223, %v2255
        %v2272 = vmul.f32 %v2224, %v2256
        %v2273 = vmul.f32 %v2225, %v2257
        %v2274 = vmul.f32 %v2226, %v2258
        %v2275 = vmul.f32 %v2227, %v2259
        %v2276 = vmul.f32 %v2228, %v2260
        %v2277 = vmul.f32 %v2229, %v2261
        %v2278 = vmul.f32 %v2230, %v2262
        %v2279 = vmul.f32 %v2231, %v2263
        %v2280 = vmul.f32 %v2232, %v2264
        %v2281 = vmul.f32 %v2233, %v2265
        %v2282 = vmul.f32 %v2234, %v2266
        %v2283 = vmul.f32 %v2235, %v2267
        %v2284 = vmul.f32 %v2236, %v2268
        %v2285 = vmul.f32 %v2237, %v2269
        %v2286 = vld [vmem:[%s8] sm:$0x1]
        %v2288 = vlaneseq
        %v2289 = vshrl.u32 %v2288, 7
        %v2290 = vsub.s32 0, %v2289
        %v2291 = vrot.slane %v2286, %v2290
        %v2293 = vmul.f32 %v2270, %v2291
        %v2294 = vmul.f32 %v2271, %v2291
        %v2295 = vmul.f32 %v2272, %v2291
        %v2296 = vmul.f32 %v2273, %v2291
        %v2297 = vmul.f32 %v2274, %v2291
        %v2298 = vmul.f32 %v2275, %v2291
        %v2299 = vmul.f32 %v2276, %v2291
        %v2300 = vmul.f32 %v2277, %v2291
        %v2301 = vmul.f32 %v2278, %v2291
        %v2302 = vmul.f32 %v2279, %v2291
        %v2303 = vmul.f32 %v2280, %v2291
        %v2304 = vmul.f32 %v2281, %v2291
        %v2305 = vmul.f32 %v2282, %v2291
        %v2306 = vmul.f32 %v2283, %v2291
        %v2307 = vmul.f32 %v2284, %v2291
        %v2308 = vmul.f32 %v2285, %v2291
        %v2309 = vld [vmem:[%s9] sm:$0x1]
        %v2311 = vlaneseq
        %v2312 = vshrl.u32 %v2311, 7
        %v2313 = vsub.s32 0, %v2312
        %v2314 = vrot.slane %v2309, %v2313
        %v2316 = vadd.f32 %v2293, %v2314
        %v2317 = vadd.f32 %v2294, %v2314
        %v2318 = vadd.f32 %v2295, %v2314
        %v2319 = vadd.f32 %v2296, %v2314
        %v2320 = vadd.f32 %v2297, %v2314
        %v2321 = vadd.f32 %v2298, %v2314
        %v2322 = vadd.f32 %v2299, %v2314
        %v2323 = vadd.f32 %v2300, %v2314
        %v2324 = vadd.f32 %v2301, %v2314
        %v2325 = vadd.f32 %v2302, %v2314
        %v2326 = vadd.f32 %v2303, %v2314
        %v2327 = vadd.f32 %v2304, %v2314
        %v2328 = vadd.f32 %v2305, %v2314
        %v2329 = vadd.f32 %v2306, %v2314
        %v2330 = vadd.f32 %v2307, %v2314
        %v2331 = vadd.f32 %v2308, %v2314
        %v2332 = vpack.c.bf16 %v2317, %v2316
        %v2333 = vpack.c.bf16 %v2319, %v2318
        %v2334 = vpack.c.bf16 %v2321, %v2320
        %v2335 = vpack.c.bf16 %v2323, %v2322
        %v2336 = vpack.c.bf16 %v2325, %v2324
        %v2337 = vpack.c.bf16 %v2327, %v2326
        %v2338 = vpack.c.bf16 %v2329, %v2328
        %v2339 = vpack.c.bf16 %v2331, %v2330
        %v2340 = vld [vmem:[%s10] sm:$0xf]
        %v2341 = vld [vmem:[%s10 + $0x4] sm:$0xf]
        %v2342 = vld [vmem:[%s10 + $0x8] sm:$0xf]
        %v2343 = vld [vmem:[%s10 + $0xc] sm:$0xf]
        %v2344 = vld [vmem:[%s11] sm:$0x1]
        %v2346 = vlaneseq
        %v2347 = vshrl.u32 %v2346, 7
        %v2348 = vsub.s32 0, %v2347
        %v2349 = vrot.slane %v2344, %v2348
        %v2355 = vunpack.c.l.b16 %v2340
        %v2356 = vunpack.c.l.b16 %v2341
        %v2357 = vunpack.c.l.b16 %v2342
        %v2358 = vunpack.c.l.b16 %v2343
        %v2359 = vpack.c.b16 %v2356, %v2355
        %v2360 = vpack.c.b16 %v2358, %v2357
        %v2364 = vsel %vm1186, %v2332, 0
        %v2367 = vsel %vm1186, %v2333, 0
        %v2370 = vsel %vm1186, %v2334, 0
        %v2373 = vsel %vm1186, %v2335, 0
        %v2376 = vsel %vm1186, %v2336, 0
        %v2379 = vsel %vm1186, %v2337, 0
        %v2382 = vsel %vm1186, %v2338, 0
        %v2385 = vsel %vm1186, %v2339, 0
        %2387 = vmatprep.subr.bf16.mxu0 0
        %2388 = vmatpush1.bf16.msra.mxu0 %v2359
        %2389 = vmatprep.subr.bf16.mxu0 0
        %2390 = vmatpush1.bf16.msra.mxu0 %v2360
        %2391 = vmatprep.subr.bf16.mxu0 0
        %2392 = vmatpush1.bf16.msra.mxu0 0
        %2393 = vmatprep.subr.bf16.mxu0 0
        %2394 = vmatpush1.bf16.msra.mxu0 0
        %2395 = vmatprep.subr.bf16.mxu0 0
        %2396 = vmatpush1.bf16.msra.mxu0 0
        %2397 = vmatprep.subr.bf16.mxu0 0
        %2398 = vmatpush1.bf16.msra.mxu0 0
        %2399 = vmatprep.subr.bf16.mxu0 0
        %2400 = vmatpush1.bf16.msra.mxu0 0
        %2401 = vmatprep.subr.bf16.mxu0 0
        %2402 = vmatpush1.bf16.msra.mxu0 0
        %2403 = vmatprep.subr.bf16.mxu0 0
        %2404 = vmatpush1.bf16.msra.mxu0 0
        %2405 = vmatprep.subr.bf16.mxu0 0
        %2406 = vmatpush1.bf16.msra.mxu0 0
        %2407 = vmatprep.subr.bf16.mxu0 0
        %2408 = vmatpush1.bf16.msra.mxu0 0
        %2409 = vmatprep.subr.bf16.mxu0 0
        %2410 = vmatpush1.bf16.msra.mxu0 0
        %2411 = vmatprep.subr.bf16.mxu0 0
        %2412 = vmatpush1.bf16.msra.mxu0 0
        %2413 = vmatprep.subr.bf16.mxu0 0
        %2414 = vmatpush1.bf16.msra.mxu0 0
        %2415 = vmatprep.subr.bf16.mxu0 0
        %2416 = vmatpush1.bf16.msra.mxu0 0
        %2417 = vmatprep.subr.bf16.mxu0 0
        %2418 = vmatpush1.bf16.msra.mxu0 0
        %2419 = vmatprep.mubr.bf16.mxu0 0
        %2420 = vmatmul.mubr.bf16.gmra.mrb[0].mxu0 %v2364
        %v2421 = vpop.f32.mrb[0].mxu0
        %v2422 = vadd.f32 %v2349, %v2421
        %v2423 = vpop.f32.mrb[0].mxu0
        %v2424 = vpop.f32.mrb[0].mxu0
        %v2425 = vadd.f32 %v2349, %v2424
        %v2426 = vpop.f32.mrb[0].mxu0
        %2427 = vmatprep.mubr.bf16.mxu0 0
        %2428 = vmatmul.mubr.bf16.gmra.mrb[0].mxu0 %v2367
        %v2429 = vpop.f32.mrb[0].mxu0
        %v2430 = vadd.f32 %v2349, %v2429
        %v2431 = vpop.f32.mrb[0].mxu0
        %v2432 = vpop.f32.mrb[0].mxu0
        %v2433 = vadd.f32 %v2349, %v2432
        %v2434 = vpop.f32.mrb[0].mxu0
        %2435 = vmatprep.mubr.bf16.mxu0 0
        %2436 = vmatmul.mubr.bf16.gmra.mrb[0].mxu0 %v2370
        %v2437 = vpop.f32.mrb[0].mxu0
        %v2438 = vadd.f32 %v2349, %v2437
        %v2439 = vpop.f32.mrb[0].mxu0
        %v2440 = vpop.f32.mrb[0].mxu0
        %v2441 = vadd.f32 %v2349, %v2440
        %v2442 = vpop.f32.mrb[0].mxu0
        %2443 = vmatprep.mubr.bf16.mxu0 0
        %2444 = vmatmul.mubr.bf16.gmra.mrb[0].mxu0 %v2373
        %v2445 = vpop.f32.mrb[0].mxu0
        %v2446 = vadd.f32 %v2349, %v2445
        %v2447 = vpop.f32.mrb[0].mxu0
        %v2448 = vpop.f32.mrb[0].mxu0
        %v2449 = vadd.f32 %v2349, %v2448
        %v2450 = vpop.f32.mrb[0].mxu0
        %2451 = vmatprep.mubr.bf16.mxu0 0
        %2452 = vmatmul.mubr.bf16.gmra.mrb[0].mxu0 %v2376
        %v2453 = vpop.f32.mrb[0].mxu0
        %v2454 = vadd.f32 %v2349, %v2453
        %v2455 = vpop.f32.mrb[0].mxu0
        %v2456 = vpop.f32.mrb[0].mxu0
        %v2457 = vadd.f32 %v2349, %v2456
        %v2458 = vpop.f32.mrb[0].mxu0
        %2459 = vmatprep.mubr.bf16.mxu0 0
        %2460 = vmatmul.mubr.bf16.gmra.mrb[0].mxu0 %v2379
        %v2461 = vpop.f32.mrb[0].mxu0
        %v2462 = vadd.f32 %v2349, %v2461
        %v2463 = vpop.f32.mrb[0].mxu0
        %v2464 = vpop.f32.mrb[0].mxu0
        %v2465 = vadd.f32 %v2349, %v2464
        %v2466 = vpop.f32.mrb[0].mxu0
        %2467 = vmatprep.mubr.bf16.mxu0 0
        %2468 = vmatmul.mubr.bf16.gmra.mrb[0].mxu0 %v2382
        %v2469 = vpop.f32.mrb[0].mxu0
        %v2470 = vadd.f32 %v2349, %v2469
        %v2471 = vpop.f32.mrb[0].mxu0
        %v2472 = vpop.f32.mrb[0].mxu0
        %v2473 = vadd.f32 %v2349, %v2472
        %v2474 = vpop.f32.mrb[0].mxu0
        %2475 = vmatprep.mubr.bf16.mxu0 0
        %2476 = vmatmul.mubr.bf16.gmra.mrb[0].mxu0 %v2385
        %v2477 = vpop.f32.mrb[0].mxu0
        %v2478 = vadd.f32 %v2349, %v2477
        %v2479 = vpop.f32.mrb[0].mxu0
        %v2480 = vpop.f32.mrb[0].mxu0
        %v2481 = vadd.f32 %v2349, %v2480
        %v2482 = vpop.f32.mrb[0].mxu0
        %2483 = vdwg.mxu0
        %2485 = vset.pattern.permute.xlu0 0
        %2486 = vperm.xlu0 %2485, %v518
        %v2487 = vpop.permute.xlu0 %2486
        %2490 = vset.pattern.permute.xlu0 0
        %2491 = vperm.xlu0 %2490, %v519
        %v2492 = vpop.permute.xlu0 %2491
        %2495 = vset.pattern.permute.xlu0 0
        %2496 = vperm.xlu0 %2495, %v520
        %v2497 = vpop.permute.xlu0 %2496
        %2500 = vset.pattern.permute.xlu0 0
        %2501 = vperm.xlu0 %2500, %v521
        %v2502 = vpop.permute.xlu0 %2501
        %2505 = vset.pattern.permute.xlu0 0
        %2506 = vperm.xlu0 %2505, %v522
        %v2507 = vpop.permute.xlu0 %2506
        %2510 = vset.pattern.permute.xlu0 0
        %2511 = vperm.xlu0 %2510, %v523
        %v2512 = vpop.permute.xlu0 %2511
        %2515 = vset.pattern.permute.xlu0 0
        %2516 = vperm.xlu0 %2515, %v524
        %v2517 = vpop.permute.xlu0 %2516
        %2520 = vset.pattern.permute.xlu0 0
        %2521 = vperm.xlu0 %2520, %v525
        %v2522 = vpop.permute.xlu0 %2521
        %2525 = vset.pattern.permute.xlu0 0
        %2526 = vperm.xlu0 %2525, %v526
        %v2527 = vpop.permute.xlu0 %2526
        %2530 = vset.pattern.permute.xlu0 0
        %2531 = vperm.xlu0 %2530, %v527
        %v2532 = vpop.permute.xlu0 %2531
        %2535 = vset.pattern.permute.xlu0 0
        %2536 = vperm.xlu0 %2535, %v528
        %v2537 = vpop.permute.xlu0 %2536
        %2540 = vset.pattern.permute.xlu0 0
        %2541 = vperm.xlu0 %2540, %v529
        %v2542 = vpop.permute.xlu0 %2541
        %2545 = vset.pattern.permute.xlu0 0
        %2546 = vperm.xlu0 %2545, %v530
        %v2547 = vpop.permute.xlu0 %2546
        %2550 = vset.pattern.permute.xlu0 0
        %2551 = vperm.xlu0 %2550, %v531
        %v2552 = vpop.permute.xlu0 %2551
        %2555 = vset.pattern.permute.xlu0 0
        %2556 = vperm.xlu0 %2555, %v532
        %v2557 = vpop.permute.xlu0 %2556
        %2560 = vset.pattern.permute.xlu0 0
        %2561 = vperm.xlu0 %2560, %v533
        %v2562 = vpop.permute.xlu0 %2561
        %v2564 = vmul.f32 %v2422, %v2487
        %v2565 = vmul.f32 %v2425, %v2492
        %v2566 = vmul.f32 %v2430, %v2497
        %v2567 = vmul.f32 %v2433, %v2502
        %v2568 = vmul.f32 %v2438, %v2507
        %v2569 = vmul.f32 %v2441, %v2512
        %v2570 = vmul.f32 %v2446, %v2517
        %v2571 = vmul.f32 %v2449, %v2522
        %v2572 = vmul.f32 %v2454, %v2527
        %v2573 = vmul.f32 %v2457, %v2532
        %v2574 = vmul.f32 %v2462, %v2537
        %v2575 = vmul.f32 %v2465, %v2542
        %v2576 = vmul.f32 %v2470, %v2547
        %v2577 = vmul.f32 %v2473, %v2552
        %v2578 = vmul.f32 %v2478, %v2557
        %v2579 = vmul.f32 %v2481, %v2562
        %2580 = vxpose.xlu0.b32.start [1/16] %v2564, 128
        %2581 = vxpose.xlu0.b32.cont [2/16] %v2565, 128
        %2582 = vxpose.xlu0.b32.cont [3/16] %v2566, 128
        %2583 = vxpose.xlu0.b32.cont [4/16] %v2567, 128
        %2584 = vxpose.xlu0.b32.cont [5/16] %v2568, 128
        %2585 = vxpose.xlu0.b32.cont [6/16] %v2569, 128
        %2586 = vxpose.xlu0.b32.cont [7/16] %v2570, 128
        %2587 = vxpose.xlu0.b32.cont [8/16] %v2571, 128
        %2588 = vxpose.xlu0.b32.cont [9/16] %v2572, 128
        %2589 = vxpose.xlu0.b32.cont [10/16] %v2573, 128
        %2590 = vxpose.xlu0.b32.cont [11/16] %v2574, 128
        %2591 = vxpose.xlu0.b32.cont [12/16] %v2575, 128
        %2592 = vxpose.xlu0.b32.cont [13/16] %v2576, 128
        %2593 = vxpose.xlu0.b32.cont [14/16] %v2577, 128
        %2594 = vxpose.xlu0.b32.cont [15/16] %v2578, 128
        %2595 = vxpose.xlu0.b32.end [16/16] %v2579, 128
        %v2596 = vpop.trf.xlu0
        %v2597 = vpop.trf.xlu0
        %v2598 = vpop.trf.xlu0
        %v2599 = vpop.trf.xlu0
        %v2600 = vpop.trf.xlu0
        %v2601 = vpop.trf.xlu0
        %v2602 = vpop.trf.xlu0
        %v2603 = vpop.trf.xlu0
        %v2604 = vpop.trf.xlu0
        %v2605 = vpop.trf.xlu0
        %v2606 = vpop.trf.xlu0
        %v2607 = vpop.trf.xlu0
        %v2608 = vpop.trf.xlu0
        %v2609 = vpop.trf.xlu0
        %v2610 = vpop.trf.xlu0
        %v2611 = vpop.trf.xlu0
        %2612 = vst [vmem:[%s448] sm:$0xff] %v2596
        %2613 = vst [vmem:[%s448 + $0x8] sm:$0xff] %v2597
        %v2614 = vmul.f32 %v2316, %v2487
        %v2615 = vmul.f32 %v2317, %v2492
        %v2616 = vmul.f32 %v2318, %v2497
        %v2617 = vmul.f32 %v2319, %v2502
        %v2618 = vmul.f32 %v2320, %v2507
        %v2619 = vmul.f32 %v2321, %v2512
        %v2620 = vmul.f32 %v2322, %v2517
        %v2621 = vmul.f32 %v2323, %v2522
        %v2622 = vmul.f32 %v2324, %v2527
        %v2623 = vmul.f32 %v2325, %v2532
        %v2624 = vmul.f32 %v2326, %v2537
        %v2625 = vmul.f32 %v2327, %v2542
        %v2626 = vmul.f32 %v2328, %v2547
        %v2627 = vmul.f32 %v2329, %v2552
        %v2628 = vmul.f32 %v2330, %v2557
        %v2629 = vmul.f32 %v2331, %v2562
        %v2630 = vcvt.s32.f32 %v481
        %v2631 = vmax.f32 %v2630, 1.0
        %v2632 = vsel %vm1186, %v2614, 0.0
        %v2633 = vsel %vm1186, %v2615, 0.0
        %v2634 = vadd.f32 %v2632, %v2633
        %v2635 = vsel %vm1186, %v2616, 0.0
        %v2636 = vadd.f32 %v2634, %v2635
        %v2637 = vsel %vm1186, %v2617, 0.0
        %v2638 = vadd.f32 %v2636, %v2637
        %v2639 = vsel %vm1186, %v2618, 0.0
        %v2640 = vadd.f32 %v2638, %v2639
        %v2641 = vsel %vm1186, %v2619, 0.0
        %v2642 = vadd.f32 %v2640, %v2641
        %v2643 = vsel %vm1186, %v2620, 0.0
        %v2644 = vadd.f32 %v2642, %v2643
        %v2645 = vsel %vm1186, %v2621, 0.0
        %v2646 = vadd.f32 %v2644, %v2645
        %v2647 = vsel %vm1186, %v2622, 0.0
        %v2648 = vadd.f32 %v2646, %v2647
        %v2649 = vsel %vm1186, %v2623, 0.0
        %v2650 = vadd.f32 %v2648, %v2649
        %v2651 = vsel %vm1186, %v2624, 0.0
        %v2652 = vadd.f32 %v2650, %v2651
        %v2653 = vsel %vm1186, %v2625, 0.0
        %v2654 = vadd.f32 %v2652, %v2653
        %v2655 = vsel %vm1186, %v2626, 0.0
        %v2656 = vadd.f32 %v2654, %v2655
        %v2657 = vsel %vm1186, %v2627, 0.0
        %v2658 = vadd.f32 %v2656, %v2657
        %v2659 = vsel %vm1186, %v2628, 0.0
        %v2660 = vadd.f32 %v2658, %v2659
        %v2661 = vsel %vm1186, %v2629, 0.0
        %v2662 = vadd.f32 %v2660, %v2661
        %v2663 = vrot.slane %v2662, 4
        %v2664 = vadd.f32 %v2662, %v2663
        %v2665 = vrot.slane %v2664, 2
        %v2666 = vadd.f32 %v2664, %v2665
        %v2667 = vrot.slane %v2666, 1
        %v2668 = vadd.f32 %v2666, %v2667
        %2670 = vset.pattern.permute.xlu0 0
        %2671 = vperm.xlu0 %2670, %v2631
        %v2672 = vpop.permute.xlu0 %2671
        %v2674 = vlaneseq
        %v2675 = vshrl.u32 %v2674, 7
        %v2676 = vsub.s32 0, %v2675
        %v2677 = vrot.slane %v2672, %v2676
        %v2678 = vrcp.pop %v2677
        %v2679 = vmul.f32 %v2668, %v2678
        %vm2680 = vcmask 253952
        %2681 = vst.msk [vmem:[%s454] sm:$0x1] %vm2680, %v2679
        %s2682 = sand.u32 %s301, 1
        %s2683 = scalar_lea.sflag [#allocation3], %s2682
        %s2684 = sand.u32 %s301, 1
        %s2685 = smul.addr %s2684, 16
        %s2686 = scalar_lea.vmem [#allocation2], %s2685
        %s2687 = sand.u32 %s327, 1
        %s2688 = scalar_lea.sflag [#allocation5], %s2687
        %s2689 = sand.u32 %s327, 1
        %s2690 = scalar_lea.vmem [#allocation4], %s2689
        // Predicated region
        $region69: #{tpu_custom_call.1} parent=67 // pred_check
          %p2691 = pneg %p311
        $region70: #{tpu_custom_call.1} parent=67 // pred_check_branch
          %2693 = sbr.rel (%p2691) target = $region72
        $region71: #{tpu_custom_call.1} parent=67 // pred_region
          %s2695 = ssub.s32 256, 256
          %2696 = vsyncadd %s2683, %s2695
          %s2697 = smul.addr %s31, 2
          %s2698 = smul.addr %s2697, 128
          %s2699 = scalar_lea.hbm %s12, %s2698
          %s2700 = sshll.u32 %s2686, 4
          %s2701 = int_to_ptr.vmem [resolvable:$true] %s2700
          %2706 = dma.vmem_to_hbm [thread:$0]  %s2701, 256, %s2699, %s2683, 128, 128, 8
        $region72: #{tpu_custom_call.1} parent=67 // pred_fallthru
          _
        // Predicated region
        $region73: #{tpu_custom_call.1} parent=67 // pred_check
          %p2707 = pneg %p337
        $region74: #{tpu_custom_call.1} parent=67 // pred_check_branch
          %2709 = sbr.rel (%p2707) target = $region76
        $region75: #{tpu_custom_call.1} parent=67 // pred_region
          %s2711 = ssub.s32 16, 16
          %2712 = vsyncadd %s2688, %s2711
          %s2713 = smul.addr %s31, 16
          %s2714 = scalar_lea.hbm %s13, %s2713
          %s2716 = sshll.u32 %s2690, 4
          %s2717 = int_to_ptr.vmem [resolvable:$true] %s2716
          %2719 = dma.vmem_to_hbm [thread:$0]  %s2717, 16, %s2714, %s2688
        $region76: #{tpu_custom_call.1} parent=67 // pred_fallthru
          _
      $region68: #{tpu_custom_call.1} parent=5 // pred_fallthru
        _
      %p2720 = scmp.le.s32.totalorder 2, %s26
      // Predicated region
      $region77: #{tpu_custom_call.1} parent=5 // pred_check
        %p2721 = pneg %p2720
      $region78: #{tpu_custom_call.1} parent=5 // pred_check_branch
        %2723 = sbr.rel (%p2721) target = $region80
      $region79: #{tpu_custom_call.1} parent=5 // pred_region
        %s2724 = ssub.s32 %s26, 2
        // Predicated region
        $region81: #{tpu_custom_call.1} parent=79 // pred_check
          %p2725 = pneg %p317
        $region82: #{tpu_custom_call.1} parent=79 // pred_check_branch
          %2727 = sbr.rel (%p2725) target = $region84
        $region83: #{tpu_custom_call.1} parent=79 // pred_region
          %s2728 = sand.u32 %s302, 1
          %s2729 = scalar_lea.sflag [#allocation3], %s2728
          %s2730 = sand.u32 %s302, 1
          %s2731 = smul.addr %s2730, 16
          %s2732 = scalar_lea.vmem [#allocation2], %s2731
          %2733 = dma.done %s2729, 256
        $region84: #{tpu_custom_call.1} parent=79 // pred_fallthru
          _
        // Predicated region
        $region85: #{tpu_custom_call.1} parent=79 // pred_check
          %p2734 = pneg %p343
        $region86: #{tpu_custom_call.1} parent=79 // pred_check_branch
          %2736 = sbr.rel (%p2734) target = $region88
        $region87: #{tpu_custom_call.1} parent=79 // pred_region
          %s2737 = sand.u32 %s328, 1
          %s2738 = scalar_lea.sflag [#allocation5], %s2737
          %s2739 = sand.u32 %s328, 1
          %s2740 = scalar_lea.vmem [#allocation4], %s2739
          %2741 = dma.done %s2738, 16
        $region88: #{tpu_custom_call.1} parent=79 // pred_fallthru
          _
      $region80: #{tpu_custom_call.1} parent=5 // pred_fallthru
        _
    $region6: #{tpu_custom_call.1} parent=1 // loop_footer
      %s30 = sadd.s32 1, %s26
    $region7: #{tpu_custom_call.1} parent=1 // loop_footer_branch
      %25 = sbr.rel target = $region3
    $region8: #{tpu_custom_call.1} parent=1 // loop_exit
      _
    %2742 = vsyncpa [#allocation3], 1
    %s2743 = scalar_lea.sflag [#allocation3], 1
    %2744 = vsyncpa %s2743, 1
    %2745 = vsyncpa [#allocation5], 1
    %s2746 = scalar_lea.sflag [#allocation5], 1
    %2747 = vsyncpa %s2746, 1

</llo_original>
